<compile_context>
chip_gen: v7x
topology: tpu7x:2x2x1
jax: 0.10.0
libtpu: 0.0.40
codegen_flags: <defaults>
</compile_context>

<pallas_src>
import jax
import jax.numpy as jnp
from jax import lax
from jax.experimental import pallas as pl
from jax.experimental.pallas import tpu as pltpu


def _encoder_kernel(xq_ref, w13_ref, w12_ref, w11_ref, b1_ref,
                    w21_ref, w22_ref, b2_ref, o_ref, h1p_ref):
    # xq_ref : (1, Ho1+1, 2, Wo2+1, 4*Cin)  pair/quad-packed padded input (bf16)
    # w13    : (3, 3*Cin, C1)  conv1 weights, taps kx=0,1,2 stacked along K
    # w12    : (3, 2*Cin, C1)  conv1 weights, taps kx=0,1
    # w11    : (3,   Cin, C1)  conv1 weights, tap  kx=2
    # b1     : (1, C1) f32
    # w21    : (3,   C1, C2)   conv2 weights, tap  kx=0
    # w22    : (3, 2*C1, C2)   conv2 weights, taps kx=1,2 stacked along K
    # b2     : (1, C2) f32
    # o_ref  : (1, Ho2*Wo2, C2)
    # h1p_ref: (Ho2+1, 2, Wo2+1, 2*C1) bf16 VMEM scratch holding the padded,
    #          pair-packed conv1 activation (the fused intermediate).
    Ho1 = xq_ref.shape[1] - 1
    Wo2 = xq_ref.shape[3] - 1
    Cin = xq_ref.shape[4] // 4
    Ho2 = Ho1 // 2
    C1 = b1_ref.shape[1]
    C2 = b2_ref.shape[1]

    # Zero the padded intermediate (scratch persists across grid steps; only
    # the halo actually needs to be zero, but the buffer is tiny).
    h1p_ref[...] = jnp.zeros(h1p_ref.shape, h1p_ref.dtype)

    # ---- conv1 + bias + ReLU, per output-column parity class qc -------------
    # Output column wo1 = 2*q + qc.  Padded input column = 4*q + (2*qc + kx),
    # i.e. column-quad q (or q+1) at a static lane offset -> contiguous slices.
    for qc in range(2):
        acc = jnp.zeros((Ho1 * Wo2, C1), jnp.float32)
        for ky in range(3):
            rp0, rs = ky // 2, ky % 2              # padded row = 2*ho1 + ky
            if qc == 0:
                # kx = 0,1,2 all live in lanes [0 : 3*Cin) of quad q.
                lhs = xq_ref[0, rp0:rp0 + Ho1, rs, 0:Wo2, 0:3 * Cin]
                acc = acc + jnp.dot(lhs.reshape(Ho1 * Wo2, 3 * Cin),
                                    w13_ref[ky],
                                    preferred_element_type=jnp.float32)
            else:
                # kx = 0,1 -> lanes [2*Cin : 4*Cin) of quad q.
                lhs = xq_ref[0, rp0:rp0 + Ho1, rs, 0:Wo2, 2 * Cin:4 * Cin]
                acc = acc + jnp.dot(lhs.reshape(Ho1 * Wo2, 2 * Cin),
                                    w12_ref[ky],
                                    preferred_element_type=jnp.float32)
                # kx = 2 -> lanes [0 : Cin) of quad q+1.
                lhs = xq_ref[0, rp0:rp0 + Ho1, rs, 1:Wo2 + 1, 0:Cin]
                acc = acc + jnp.dot(lhs.reshape(Ho1 * Wo2, Cin),
                                    w11_ref[ky],
                                    preferred_element_type=jnp.float32)
        h1 = jnp.maximum(acc + b1_ref[...], 0.0).astype(h1p_ref.dtype)
        # acc rows are ordered (ho1, q); split ho1 into (row-pair, sub-row) and
        # drop the class into the scratch (column parity qc -> lane half qc).
        h1p_ref[1:Ho2 + 1, :, 1:Wo2 + 1, qc * C1:(qc + 1) * C1] = (
            h1.reshape(Ho2, 2, Wo2, C1))

    # ---- conv2 + bias + ReLU on the VMEM-resident intermediate --------------
    acc2 = jnp.zeros((Ho2 * Wo2, C2), jnp.float32)
    for ky in range(3):
        rp0 = 0 if ky == 0 else 1                  # h1 row = 2*ho2 + ky - 1
        rs = 0 if ky == 1 else 1
        # kx = 0: lane half 1 of column-pair wo2.
        lhs = h1p_ref[rp0:rp0 + Ho2, rs, 0:Wo2, C1:2 * C1]
        acc2 = acc2 + jnp.dot(lhs.reshape(Ho2 * Wo2, C1), w21_ref[ky],
                              preferred_element_type=jnp.float32)
        # kx = 1,2: both lane halves of column-pair wo2+1 (merged K = 2*C1).
        lhs = h1p_ref[rp0:rp0 + Ho2, rs, 1:Wo2 + 1, :]
        acc2 = acc2 + jnp.dot(lhs.reshape(Ho2 * Wo2, 2 * C1), w22_ref[ky],
                              preferred_element_type=jnp.float32)

    out = jnp.maximum(acc2 + b2_ref[...], 0.0)
    o_ref[0, :, :] = out.astype(o_ref.dtype)


class EncoderPallas:
    """Pallas port of Encoder(n_inputs, out_ch, n_downs=2, nonlinear='relu')."""

    def __init__(self, n_inputs, out_ch, key):
        chan = 16
        k1, k2, k3, k4 = jax.random.split(key, 4)
        # Deterministic synthetic parameters (HWIO layout); f32 masters for the
        # reference, bf16 packed copies for the kernel.
        self.w1 = 0.1 * jax.random.normal(k1, (3, 3, n_inputs, chan), jnp.float32)
        self.b1 = 0.1 * jax.random.normal(k2, (chan,), jnp.float32)
        self.w2 = 0.1 * jax.random.normal(k3, (3, 3, chan, out_ch), jnp.float32)
        self.b2 = 0.1 * jax.random.normal(k4, (out_ch,), jnp.float32)
        self.cin, self.c1, self.c2 = n_inputs, chan, out_ch

        bf = jnp.bfloat16
        # conv1 taps merged along K to match the lane packing of the input.
        self.w13 = self.w1.reshape(3, 3 * n_inputs, chan).astype(bf)           # kx=0,1,2
        self.w12 = self.w1[:, 0:2].reshape(3, 2 * n_inputs, chan).astype(bf)   # kx=0,1
        self.w11 = self.w1[:, 2].astype(bf)                                    # kx=2
        # conv2 taps merged along K to match the lane packing of the scratch.
        self.w21 = self.w2[:, 0].astype(bf)                                    # kx=0
        self.w22 = self.w2[:, 1:3].reshape(3, 2 * chan, out_ch).astype(bf)     # kx=1,2
        self.b1p = self.b1.reshape(1, chan).astype(jnp.float32)
        self.b2p = self.b2.reshape(1, out_ch).astype(jnp.float32)

    def __call__(self, x_nchw):
        x = jnp.transpose(x_nchw, (0, 2, 3, 1))        # NCHW -> NHWC
        N, H, W, Cin = x.shape
        assert H % 4 == 0 and W % 4 == 0, "H, W must be divisible by 4 (n_downs=2)"
        Ho1 = H // 2
        Ho2, Wo2 = H // 4, W // 4
        C1, C2 = self.c1, self.c2

        # Pad (1 top/left, 1 bottom, 3 right so width is a multiple of 4; the
        # two extra zero columns are never read) and pack the stride-2
        # structure: rows -> (row_pair, 2), column quads -> lanes (4*Cin).
        # One small pad + a free reshape; no im2col tensor in HBM.
        xp = jnp.pad(x.astype(jnp.bfloat16), ((0, 0), (1, 1), (1, 3), (0, 0)))
        xq = xp.reshape(N, Ho1 + 1, 2, Wo2 + 1, 4 * Cin)

        out = pl.pallas_call(
            _encoder_kernel,
            out_shape=jax.ShapeDtypeStruct((N, Ho2 * Wo2, C2), jnp.float32),
            grid_spec=pltpu.PrefetchScalarGridSpec(
                num_scalar_prefetch=0,
                grid=(N,),
                in_specs=[
                    pl.BlockSpec((1, Ho1 + 1, 2, Wo2 + 1, 4 * Cin),
                                 lambda n: (n, 0, 0, 0, 0)),
                    pl.BlockSpec((3, 3 * Cin, C1), lambda n: (0, 0, 0)),
                    pl.BlockSpec((3, 2 * Cin, C1), lambda n: (0, 0, 0)),
                    pl.BlockSpec((3, Cin, C1), lambda n: (0, 0, 0)),
                    pl.BlockSpec((1, C1), lambda n: (0, 0)),
                    pl.BlockSpec((3, C1, C2), lambda n: (0, 0, 0)),
                    pl.BlockSpec((3, 2 * C1, C2), lambda n: (0, 0, 0)),
                    pl.BlockSpec((1, C2), lambda n: (0, 0)),
                ],
                out_specs=pl.BlockSpec((1, Ho2 * Wo2, C2), lambda n: (n, 0, 0)),
                scratch_shapes=[
                    pltpu.VMEM((Ho2 + 1, 2, Wo2 + 1, 2 * C1), jnp.bfloat16),
                ],
            ),
            compiler_params=pltpu.CompilerParams(
                dimension_semantics=("parallel",)),
        )(xq, self.w13, self.w12, self.w11, self.b1p,
          self.w21, self.w22, self.b2p)

        y = out.reshape(N, Ho2, Wo2, C2)
        return jnp.transpose(y, (0, 3, 1, 2))          # NHWC -> NCHW


def _reference_forward(x_nchw, enc):
    """Pure-JAX reference (lax.conv), with the same bf16 rounding as the kernel."""
    rd = lambda a: a.astype(jnp.bfloat16).astype(jnp.float32)
    x = rd(jnp.transpose(x_nchw, (0, 2, 3, 1)))

    def conv(h, w, b):
        y = lax.conv_general_dilated(
            h, rd(w), window_strides=(2, 2), padding=((1, 1), (1, 1)),
            dimension_numbers=("NHWC", "HWIO", "NHWC"),
            preferred_element_type=jnp.float32)
        return jnp.maximum(y + b[None, None, None, :], 0.0)

    h = rd(conv(x, enc.w1, enc.b1))        # kernel keeps the intermediate in bf16
    h = conv(h, enc.w2, enc.b2)
    return jnp.transpose(h, (0, 3, 1, 2))


if __name__ == "__main__":
    key = jax.random.PRNGKey(0)
    kx, kp = jax.random.split(key)

    # Small shapes consistent with the module: n_inputs=4, out_ch=32, n_downs=2.
    N, C, H, W = 2, 4, 16, 16
    out_ch = 32
    x = jax.random.normal(kx, (N, C, H, W), jnp.float32)

    enc = EncoderPallas(n_inputs=C, out_ch=out_ch, key=kp)

    y = jax.block_until_ready(enc(x))
    y_ref = jax.block_until_ready(_reference_forward(x, enc))

    assert y.shape == (N, out_ch, H // 4, W // 4), y.shape
    assert jnp.allclose(y, y_ref, rtol=2e-2, atol=2e-2), (
        "max abs err: " + str(float(jnp.max(jnp.abs(y - y_ref)))))

    print("KERNEL_OK")
</pallas_src>

<mosaic_0001>
module attributes {stable_mosaic.version = 11 : i64} {
  func.func @_encoder_kernel(%arg0: i32, %arg1: memref<1x9x2x5x16xbf16, #tpu.memory_space<vmem>>, %arg2: memref<3x12x16xbf16, #tpu.memory_space<vmem>>, %arg3: memref<3x8x16xbf16, #tpu.memory_space<vmem>>, %arg4: memref<3x4x16xbf16, #tpu.memory_space<vmem>>, %arg5: memref<1x16xf32, #tpu.memory_space<vmem>>, %arg6: memref<3x16x32xbf16, #tpu.memory_space<vmem>>, %arg7: memref<3x32x32xbf16, #tpu.memory_space<vmem>>, %arg8: memref<1x32xf32, #tpu.memory_space<vmem>>, %arg9: memref<1x16x32xf32, #tpu.memory_space<vmem>>, %arg10: memref<5x2x5x32xbf16, #tpu.memory_space<vmem>>) attributes {dimension_semantics = [#tpu.dimension_semantics<parallel>], iteration_bounds = array<i64: 2>, scalar_prefetch = 0 : i64, scratch_operands = 1 : i64, tpu.core_type = #tpu.core_type<tc>, window_params = [{transform_indices = @transform_0, window_bounds = array<i64: 1, 9, 2, 5, 16>}, {pipeline_mode = #tpu.pipeline_mode<synchronous>, transform_indices = @transform_1, window_bounds = array<i64: 3, 12, 16>}, {pipeline_mode = #tpu.pipeline_mode<synchronous>, transform_indices = @transform_2, window_bounds = array<i64: 3, 8, 16>}, {pipeline_mode = #tpu.pipeline_mode<synchronous>, transform_indices = @transform_3, window_bounds = array<i64: 3, 4, 16>}, {pipeline_mode = #tpu.pipeline_mode<synchronous>, transform_indices = @transform_4, window_bounds = array<i64: 1, 16>}, {pipeline_mode = #tpu.pipeline_mode<synchronous>, transform_indices = @transform_5, window_bounds = array<i64: 3, 16, 32>}, {pipeline_mode = #tpu.pipeline_mode<synchronous>, transform_indices = @transform_6, window_bounds = array<i64: 3, 32, 32>}, {pipeline_mode = #tpu.pipeline_mode<synchronous>, transform_indices = @transform_7, window_bounds = array<i64: 1, 32>}, {transform_indices = @transform_8, window_bounds = array<i64: 1, 16, 32>}]} {
    %cst = arith.constant 0.000000e+00 : bf16
    %0 = vector.broadcast %cst : bf16 to vector<5x2x5x32xbf16>
    %c0 = arith.constant 0 : index
    %c0_0 = arith.constant 0 : index
    %c0_1 = arith.constant 0 : index
    %c0_2 = arith.constant 0 : index
    %1 = vector.load %arg10[%c0, %c0_0, %c0_1, %c0_2] : memref<5x2x5x32xbf16, #tpu.memory_space<vmem>>, vector<5x2x5x32xbf16>
    tpu.vector_store %arg10[%c0, %c0_0, %c0_1, %c0_2], %0 {strides = array<i32>} : memref<5x2x5x32xbf16, #tpu.memory_space<vmem>>, vector<5x2x5x32xbf16>,
    %cst_3 = arith.constant 0.000000e+00 : f32
    %2 = vector.broadcast %cst_3 : f32 to vector<32x16xf32>
    %c0_4 = arith.constant 0 : index
    %c0_5 = arith.constant 0 : index
    %c0_6 = arith.constant 0 : index
    %c0_7 = arith.constant 0 : index
    %c0_8 = arith.constant 0 : index
    %3 = vector.load %arg1[%c0_4, %c0_5, %c0_6, %c0_7, %c0_8] : memref<1x9x2x5x16xbf16, #tpu.memory_space<vmem>>, vector<1x8x1x4x12xbf16>
    %4 = vector.shape_cast %3 : vector<1x8x1x4x12xbf16> to vector<8x4x12xbf16>
    %5 = vector.shape_cast %4 : vector<8x4x12xbf16> to vector<32x12xbf16>
    %c0_9 = arith.constant 0 : index
    %c0_10 = arith.constant 0 : index
    %c0_11 = arith.constant 0 : index
    %6 = vector.load %arg2[%c0_9, %c0_10, %c0_11] : memref<3x12x16xbf16, #tpu.memory_space<vmem>>, vector<1x12x16xbf16>
    %7 = vector.shape_cast %6 : vector<1x12x16xbf16> to vector<12x16xbf16>
    %cst_12 = arith.constant dense<0.000000e+00> : vector<32x16xf32>
    %8 = tpu.matmul %5, %7, %cst_12 {dimension_numbers = #tpu.dot_dimension_numbers<[1], [0], [0], [1], [0, 0, 1, 1], [], []>} : vector<32x12xbf16>, vector<12x16xbf16>, vector<32x16xf32> -> vector<32x16xf32>
    %9 = arith.addf %2, %8 : vector<32x16xf32>
    %c0_13 = arith.constant 0 : index
    %c0_14 = arith.constant 0 : index
    %c1 = arith.constant 1 : index
    %c0_15 = arith.constant 0 : index
    %c0_16 = arith.constant 0 : index
    %10 = vector.load %arg1[%c0_13, %c0_14, %c1, %c0_15, %c0_16] : memref<1x9x2x5x16xbf16, #tpu.memory_space<vmem>>, vector<1x8x1x4x12xbf16>
    %11 = vector.shape_cast %10 : vector<1x8x1x4x12xbf16> to vector<8x4x12xbf16>
    %12 = vector.shape_cast %11 : vector<8x4x12xbf16> to vector<32x12xbf16>
    %c1_17 = arith.constant 1 : index
    %c0_18 = arith.constant 0 : index
    %c0_19 = arith.constant 0 : index
    %13 = vector.load %arg2[%c1_17, %c0_18, %c0_19] : memref<3x12x16xbf16, #tpu.memory_space<vmem>>, vector<1x12x16xbf16>
    %14 = vector.shape_cast %13 : vector<1x12x16xbf16> to vector<12x16xbf16>
    %cst_20 = arith.constant dense<0.000000e+00> : vector<32x16xf32>
    %15 = tpu.matmul %12, %14, %cst_20 {dimension_numbers = #tpu.dot_dimension_numbers<[1], [0], [0], [1], [0, 0, 1, 1], [], []>} : vector<32x12xbf16>, vector<12x16xbf16>, vector<32x16xf32> -> vector<32x16xf32>
    %16 = arith.addf %9, %15 : vector<32x16xf32>
    %c0_21 = arith.constant 0 : index
    %c1_22 = arith.constant 1 : index
    %c0_23 = arith.constant 0 : index
    %c0_24 = arith.constant 0 : index
    %c0_25 = arith.constant 0 : index
    %17 = vector.load %arg1[%c0_21, %c1_22, %c0_23, %c0_24, %c0_25] : memref<1x9x2x5x16xbf16, #tpu.memory_space<vmem>>, vector<1x8x1x4x12xbf16>
    %18 = vector.shape_cast %17 : vector<1x8x1x4x12xbf16> to vector<8x4x12xbf16>
    %19 = vector.shape_cast %18 : vector<8x4x12xbf16> to vector<32x12xbf16>
    %c2 = arith.constant 2 : index
    %c0_26 = arith.constant 0 : index
    %c0_27 = arith.constant 0 : index
    %20 = vector.load %arg2[%c2, %c0_26, %c0_27] : memref<3x12x16xbf16, #tpu.memory_space<vmem>>, vector<1x12x16xbf16>
    %21 = vector.shape_cast %20 : vector<1x12x16xbf16> to vector<12x16xbf16>
    %cst_28 = arith.constant dense<0.000000e+00> : vector<32x16xf32>
    %22 = tpu.matmul %19, %21, %cst_28 {dimension_numbers = #tpu.dot_dimension_numbers<[1], [0], [0], [1], [0, 0, 1, 1], [], []>} : vector<32x12xbf16>, vector<12x16xbf16>, vector<32x16xf32> -> vector<32x16xf32>
    %23 = arith.addf %16, %22 : vector<32x16xf32>
    %c0_29 = arith.constant 0 : index
    %c0_30 = arith.constant 0 : index
    %24 = vector.load %arg5[%c0_29, %c0_30] : memref<1x16xf32, #tpu.memory_space<vmem>>, vector<1x16xf32>
    %25 = vector.broadcast %24 : vector<1x16xf32> to vector<32x16xf32>
    %26 = arith.addf %23, %25 : vector<32x16xf32>
    %cst_31 = arith.constant 0.000000e+00 : f32
    %27 = vector.broadcast %cst_31 : f32 to vector<32x16xf32>
    %28 = arith.maximumf %26, %27 : vector<32x16xf32>
    %29 = arith.truncf %28 : vector<32x16xf32> to vector<32x16xbf16>
    %30 = vector.shape_cast %29 : vector<32x16xbf16> to vector<4x2x4x16xbf16>
    %c1_32 = arith.constant 1 : index
    %c0_33 = arith.constant 0 : index
    %c1_34 = arith.constant 1 : index
    %c0_35 = arith.constant 0 : index
    %31 = vector.load %arg10[%c1_32, %c0_33, %c1_34, %c0_35] : memref<5x2x5x32xbf16, #tpu.memory_space<vmem>>, vector<4x2x4x16xbf16>
    tpu.vector_store %arg10[%c1_32, %c0_33, %c1_34, %c0_35], %30 {strides = array<i32>} : memref<5x2x5x32xbf16, #tpu.memory_space<vmem>>, vector<4x2x4x16xbf16>,
    %cst_36 = arith.constant 0.000000e+00 : f32
    %32 = vector.broadcast %cst_36 : f32 to vector<32x16xf32>
    %c0_37 = arith.constant 0 : index
    %c0_38 = arith.constant 0 : index
    %c0_39 = arith.constant 0 : index
    %c0_40 = arith.constant 0 : index
    %c8 = arith.constant 8 : index
    %33 = vector.load %arg1[%c0_37, %c0_38, %c0_39, %c0_40, %c8] : memref<1x9x2x5x16xbf16, #tpu.memory_space<vmem>>, vector<1x8x1x4x8xbf16>
    %34 = vector.shape_cast %33 : vector<1x8x1x4x8xbf16> to vector<8x4x8xbf16>
    %35 = vector.shape_cast %34 : vector<8x4x8xbf16> to vector<32x8xbf16>
    %c0_41 = arith.constant 0 : index
    %c0_42 = arith.constant 0 : index
    %c0_43 = arith.constant 0 : index
    %36 = vector.load %arg3[%c0_41, %c0_42, %c0_43] : memref<3x8x16xbf16, #tpu.memory_space<vmem>>, vector<1x8x16xbf16>
    %37 = vector.shape_cast %36 : vector<1x8x16xbf16> to vector<8x16xbf16>
    %cst_44 = arith.constant dense<0.000000e+00> : vector<32x16xf32>
    %38 = tpu.matmul %35, %37, %cst_44 {dimension_numbers = #tpu.dot_dimension_numbers<[1], [0], [0], [1], [0, 0, 1, 1], [], []>} : vector<32x8xbf16>, vector<8x16xbf16>, vector<32x16xf32> -> vector<32x16xf32>
    %39 = arith.addf %32, %38 : vector<32x16xf32>
    %c0_45 = arith.constant 0 : index
    %c0_46 = arith.constant 0 : index
    %c0_47 = arith.constant 0 : index
    %c1_48 = arith.constant 1 : index
    %c0_49 = arith.constant 0 : index
    %40 = vector.load %arg1[%c0_45, %c0_46, %c0_47, %c1_48, %c0_49] : memref<1x9x2x5x16xbf16, #tpu.memory_space<vmem>>, vector<1x8x1x4x4xbf16>
    %41 = vector.shape_cast %40 : vector<1x8x1x4x4xbf16> to vector<8x4x4xbf16>
    %42 = vector.shape_cast %41 : vector<8x4x4xbf16> to vector<32x4xbf16>
    %c0_50 = arith.constant 0 : index
    %c0_51 = arith.constant 0 : index
    %c0_52 = arith.constant 0 : index
    %43 = vector.load %arg4[%c0_50, %c0_51, %c0_52] : memref<3x4x16xbf16, #tpu.memory_space<vmem>>, vector<1x4x16xbf16>
    %44 = vector.shape_cast %43 : vector<1x4x16xbf16> to vector<4x16xbf16>
    %cst_53 = arith.constant dense<0.000000e+00> : vector<32x16xf32>
    %45 = tpu.matmul %42, %44, %cst_53 {dimension_numbers = #tpu.dot_dimension_numbers<[1], [0], [0], [1], [0, 0, 1, 1], [], []>} : vector<32x4xbf16>, vector<4x16xbf16>, vector<32x16xf32> -> vector<32x16xf32>
    %46 = arith.addf %39, %45 : vector<32x16xf32>
    %c0_54 = arith.constant 0 : index
    %c0_55 = arith.constant 0 : index
    %c1_56 = arith.constant 1 : index
    %c0_57 = arith.constant 0 : index
    %c8_58 = arith.constant 8 : index
    %47 = vector.load %arg1[%c0_54, %c0_55, %c1_56, %c0_57, %c8_58] : memref<1x9x2x5x16xbf16, #tpu.memory_space<vmem>>, vector<1x8x1x4x8xbf16>
    %48 = vector.shape_cast %47 : vector<1x8x1x4x8xbf16> to vector<8x4x8xbf16>
    %49 = vector.shape_cast %48 : vector<8x4x8xbf16> to vector<32x8xbf16>
    %c1_59 = arith.constant 1 : index
    %c0_60 = arith.constant 0 : index
    %c0_61 = arith.constant 0 : index
    %50 = vector.load %arg3[%c1_59, %c0_60, %c0_61] : memref<3x8x16xbf16, #tpu.memory_space<vmem>>, vector<1x8x16xbf16>
    %51 = vector.shape_cast %50 : vector<1x8x16xbf16> to vector<8x16xbf16>
    %cst_62 = arith.constant dense<0.000000e+00> : vector<32x16xf32>
    %52 = tpu.matmul %49, %51, %cst_62 {dimension_numbers = #tpu.dot_dimension_numbers<[1], [0], [0], [1], [0, 0, 1, 1], [], []>} : vector<32x8xbf16>, vector<8x16xbf16>, vector<32x16xf32> -> vector<32x16xf32>
    %53 = arith.addf %46, %52 : vector<32x16xf32>
    %c0_63 = arith.constant 0 : index
    %c0_64 = arith.constant 0 : index
    %c1_65 = arith.constant 1 : index
    %c1_66 = arith.constant 1 : index
    %c0_67 = arith.constant 0 : index
    %54 = vector.load %arg1[%c0_63, %c0_64, %c1_65, %c1_66, %c0_67] : memref<1x9x2x5x16xbf16, #tpu.memory_space<vmem>>, vector<1x8x1x4x4xbf16>
    %55 = vector.shape_cast %54 : vector<1x8x1x4x4xbf16> to vector<8x4x4xbf16>
    %56 = vector.shape_cast %55 : vector<8x4x4xbf16> to vector<32x4xbf16>
    %c1_68 = arith.constant 1 : index
    %c0_69 = arith.constant 0 : index
    %c0_70 = arith.constant 0 : index
    %57 = vector.load %arg4[%c1_68, %c0_69, %c0_70] : memref<3x4x16xbf16, #tpu.memory_space<vmem>>, vector<1x4x16xbf16>
    %58 = vector.shape_cast %57 : vector<1x4x16xbf16> to vector<4x16xbf16>
    %cst_71 = arith.constant dense<0.000000e+00> : vector<32x16xf32>
    %59 = tpu.matmul %56, %58, %cst_71 {dimension_numbers = #tpu.dot_dimension_numbers<[1], [0], [0], [1], [0, 0, 1, 1], [], []>} : vector<32x4xbf16>, vector<4x16xbf16>, vector<32x16xf32> -> vector<32x16xf32>
    %60 = arith.addf %53, %59 : vector<32x16xf32>
    %c0_72 = arith.constant 0 : index
    %c1_73 = arith.constant 1 : index
    %c0_74 = arith.constant 0 : index
    %c0_75 = arith.constant 0 : index
    %c8_76 = arith.constant 8 : index
    %61 = vector.load %arg1[%c0_72, %c1_73, %c0_74, %c0_75, %c8_76] : memref<1x9x2x5x16xbf16, #tpu.memory_space<vmem>>, vector<1x8x1x4x8xbf16>
    %62 = vector.shape_cast %61 : vector<1x8x1x4x8xbf16> to vector<8x4x8xbf16>
    %63 = vector.shape_cast %62 : vector<8x4x8xbf16> to vector<32x8xbf16>
    %c2_77 = arith.constant 2 : index
    %c0_78 = arith.constant 0 : index
    %c0_79 = arith.constant 0 : index
    %64 = vector.load %arg3[%c2_77, %c0_78, %c0_79] : memref<3x8x16xbf16, #tpu.memory_space<vmem>>, vector<1x8x16xbf16>
    %65 = vector.shape_cast %64 : vector<1x8x16xbf16> to vector<8x16xbf16>
    %cst_80 = arith.constant dense<0.000000e+00> : vector<32x16xf32>
    %66 = tpu.matmul %63, %65, %cst_80 {dimension_numbers = #tpu.dot_dimension_numbers<[1], [0], [0], [1], [0, 0, 1, 1], [], []>} : vector<32x8xbf16>, vector<8x16xbf16>, vector<32x16xf32> -> vector<32x16xf32>
    %67 = arith.addf %60, %66 : vector<32x16xf32>
    %c0_81 = arith.constant 0 : index
    %c1_82 = arith.constant 1 : index
    %c0_83 = arith.constant 0 : index
    %c1_84 = arith.constant 1 : index
    %c0_85 = arith.constant 0 : index
    %68 = vector.load %arg1[%c0_81, %c1_82, %c0_83, %c1_84, %c0_85] : memref<1x9x2x5x16xbf16, #tpu.memory_space<vmem>>, vector<1x8x1x4x4xbf16>
    %69 = vector.shape_cast %68 : vector<1x8x1x4x4xbf16> to vector<8x4x4xbf16>
    %70 = vector.shape_cast %69 : vector<8x4x4xbf16> to vector<32x4xbf16>
    %c2_86 = arith.constant 2 : index
    %c0_87 = arith.constant 0 : index
    %c0_88 = arith.constant 0 : index
    %71 = vector.load %arg4[%c2_86, %c0_87, %c0_88] : memref<3x4x16xbf16, #tpu.memory_space<vmem>>, vector<1x4x16xbf16>
    %72 = vector.shape_cast %71 : vector<1x4x16xbf16> to vector<4x16xbf16>
    %cst_89 = arith.constant dense<0.000000e+00> : vector<32x16xf32>
    %73 = tpu.matmul %70, %72, %cst_89 {dimension_numbers = #tpu.dot_dimension_numbers<[1], [0], [0], [1], [0, 0, 1, 1], [], []>} : vector<32x4xbf16>, vector<4x16xbf16>, vector<32x16xf32> -> vector<32x16xf32>
    %74 = arith.addf %67, %73 : vector<32x16xf32>
    %c0_90 = arith.constant 0 : index
    %c0_91 = arith.constant 0 : index
    %75 = vector.load %arg5[%c0_90, %c0_91] : memref<1x16xf32, #tpu.memory_space<vmem>>, vector<1x16xf32>
    %76 = vector.broadcast %75 : vector<1x16xf32> to vector<32x16xf32>
    %77 = arith.addf %74, %76 : vector<32x16xf32>
    %cst_92 = arith.constant 0.000000e+00 : f32
    %78 = vector.broadcast %cst_92 : f32 to vector<32x16xf32>
    %79 = arith.maximumf %77, %78 : vector<32x16xf32>
    %80 = arith.truncf %79 : vector<32x16xf32> to vector<32x16xbf16>
    %81 = vector.shape_cast %80 : vector<32x16xbf16> to vector<4x2x4x16xbf16>
    %c1_93 = arith.constant 1 : index
    %c0_94 = arith.constant 0 : index
    %c1_95 = arith.constant 1 : index
    %c16 = arith.constant 16 : index
    %82 = vector.load %arg10[%c1_93, %c0_94, %c1_95, %c16] : memref<5x2x5x32xbf16, #tpu.memory_space<vmem>>, vector<4x2x4x16xbf16>
    tpu.vector_store %arg10[%c1_93, %c0_94, %c1_95, %c16], %81 {strides = array<i32>} : memref<5x2x5x32xbf16, #tpu.memory_space<vmem>>, vector<4x2x4x16xbf16>,
    %cst_96 = arith.constant 0.000000e+00 : f32
    %83 = vector.broadcast %cst_96 : f32 to vector<16x32xf32>
    %c0_97 = arith.constant 0 : index
    %c1_98 = arith.constant 1 : index
    %c0_99 = arith.constant 0 : index
    %c16_100 = arith.constant 16 : index
    %84 = vector.load %arg10[%c0_97, %c1_98, %c0_99, %c16_100] : memref<5x2x5x32xbf16, #tpu.memory_space<vmem>>, vector<4x1x4x16xbf16>
    %85 = vector.shape_cast %84 : vector<4x1x4x16xbf16> to vector<4x4x16xbf16>
    %86 = vector.shape_cast %85 : vector<4x4x16xbf16> to vector<16x16xbf16>
    %c0_101 = arith.constant 0 : index
    %c0_102 = arith.constant 0 : index
    %c0_103 = arith.constant 0 : index
    %87 = vector.load %arg6[%c0_101, %c0_102, %c0_103] : memref<3x16x32xbf16, #tpu.memory_space<vmem>>, vector<1x16x32xbf16>
    %88 = vector.shape_cast %87 : vector<1x16x32xbf16> to vector<16x32xbf16>
    %cst_104 = arith.constant dense<0.000000e+00> : vector<16x32xf32>
    %89 = tpu.matmul %86, %88, %cst_104 {dimension_numbers = #tpu.dot_dimension_numbers<[1], [0], [0], [1], [0, 0, 1, 1], [], []>} : vector<16x16xbf16>, vector<16x32xbf16>, vector<16x32xf32> -> vector<16x32xf32>
    %90 = arith.addf %83, %89 : vector<16x32xf32>
    %c0_105 = arith.constant 0 : index
    %c1_106 = arith.constant 1 : index
    %c1_107 = arith.constant 1 : index
    %c0_108 = arith.constant 0 : index
    %91 = vector.load %arg10[%c0_105, %c1_106, %c1_107, %c0_108] : memref<5x2x5x32xbf16, #tpu.memory_space<vmem>>, vector<4x1x4x32xbf16>
    %92 = vector.shape_cast %91 : vector<4x1x4x32xbf16> to vector<4x4x32xbf16>
    %93 = vector.shape_cast %92 : vector<4x4x32xbf16> to vector<16x32xbf16>
    %c0_109 = arith.constant 0 : index
    %c0_110 = arith.constant 0 : index
    %c0_111 = arith.constant 0 : index
    %94 = vector.load %arg7[%c0_109, %c0_110, %c0_111] : memref<3x32x32xbf16, #tpu.memory_space<vmem>>, vector<1x32x32xbf16>
    %95 = vector.shape_cast %94 : vector<1x32x32xbf16> to vector<32x32xbf16>
    %cst_112 = arith.constant dense<0.000000e+00> : vector<16x32xf32>
    %96 = tpu.matmul %93, %95, %cst_112 {dimension_numbers = #tpu.dot_dimension_numbers<[1], [0], [0], [1], [0, 0, 1, 1], [], []>} : vector<16x32xbf16>, vector<32x32xbf16>, vector<16x32xf32> -> vector<16x32xf32>
    %97 = arith.addf %90, %96 : vector<16x32xf32>
    %c1_113 = arith.constant 1 : index
    %c0_114 = arith.constant 0 : index
    %c0_115 = arith.constant 0 : index
    %c16_116 = arith.constant 16 : index
    %98 = vector.load %arg10[%c1_113, %c0_114, %c0_115, %c16_116] : memref<5x2x5x32xbf16, #tpu.memory_space<vmem>>, vector<4x1x4x16xbf16>
    %99 = vector.shape_cast %98 : vector<4x1x4x16xbf16> to vector<4x4x16xbf16>
    %100 = vector.shape_cast %99 : vector<4x4x16xbf16> to vector<16x16xbf16>
    %c1_117 = arith.constant 1 : index
    %c0_118 = arith.constant 0 : index
    %c0_119 = arith.constant 0 : index
    %101 = vector.load %arg6[%c1_117, %c0_118, %c0_119] : memref<3x16x32xbf16, #tpu.memory_space<vmem>>, vector<1x16x32xbf16>
    %102 = vector.shape_cast %101 : vector<1x16x32xbf16> to vector<16x32xbf16>
    %cst_120 = arith.constant dense<0.000000e+00> : vector<16x32xf32>
    %103 = tpu.matmul %100, %102, %cst_120 {dimension_numbers = #tpu.dot_dimension_numbers<[1], [0], [0], [1], [0, 0, 1, 1], [], []>} : vector<16x16xbf16>, vector<16x32xbf16>, vector<16x32xf32> -> vector<16x32xf32>
    %104 = arith.addf %97, %103 : vector<16x32xf32>
    %c1_121 = arith.constant 1 : index
    %c0_122 = arith.constant 0 : index
    %c1_123 = arith.constant 1 : index
    %c0_124 = arith.constant 0 : index
    %105 = vector.load %arg10[%c1_121, %c0_122, %c1_123, %c0_124] : memref<5x2x5x32xbf16, #tpu.memory_space<vmem>>, vector<4x1x4x32xbf16>
    %106 = vector.shape_cast %105 : vector<4x1x4x32xbf16> to vector<4x4x32xbf16>
    %107 = vector.shape_cast %106 : vector<4x4x32xbf16> to vector<16x32xbf16>
    %c1_125 = arith.constant 1 : index
    %c0_126 = arith.constant 0 : index
    %c0_127 = arith.constant 0 : index
    %108 = vector.load %arg7[%c1_125, %c0_126, %c0_127] : memref<3x32x32xbf16, #tpu.memory_space<vmem>>, vector<1x32x32xbf16>
    %109 = vector.shape_cast %108 : vector<1x32x32xbf16> to vector<32x32xbf16>
    %cst_128 = arith.constant dense<0.000000e+00> : vector<16x32xf32>
    %110 = tpu.matmul %107, %109, %cst_128 {dimension_numbers = #tpu.dot_dimension_numbers<[1], [0], [0], [1], [0, 0, 1, 1], [], []>} : vector<16x32xbf16>, vector<32x32xbf16>, vector<16x32xf32> -> vector<16x32xf32>
    %111 = arith.addf %104, %110 : vector<16x32xf32>
    %c1_129 = arith.constant 1 : index
    %c1_130 = arith.constant 1 : index
    %c0_131 = arith.constant 0 : index
    %c16_132 = arith.constant 16 : index
    %112 = vector.load %arg10[%c1_129, %c1_130, %c0_131, %c16_132] : memref<5x2x5x32xbf16, #tpu.memory_space<vmem>>, vector<4x1x4x16xbf16>
    %113 = vector.shape_cast %112 : vector<4x1x4x16xbf16> to vector<4x4x16xbf16>
    %114 = vector.shape_cast %113 : vector<4x4x16xbf16> to vector<16x16xbf16>
    %c2_133 = arith.constant 2 : index
    %c0_134 = arith.constant 0 : index
    %c0_135 = arith.constant 0 : index
    %115 = vector.load %arg6[%c2_133, %c0_134, %c0_135] : memref<3x16x32xbf16, #tpu.memory_space<vmem>>, vector<1x16x32xbf16>
    %116 = vector.shape_cast %115 : vector<1x16x32xbf16> to vector<16x32xbf16>
    %cst_136 = arith.constant dense<0.000000e+00> : vector<16x32xf32>
    %117 = tpu.matmul %114, %116, %cst_136 {dimension_numbers = #tpu.dot_dimension_numbers<[1], [0], [0], [1], [0, 0, 1, 1], [], []>} : vector<16x16xbf16>, vector<16x32xbf16>, vector<16x32xf32> -> vector<16x32xf32>
    %118 = arith.addf %111, %117 : vector<16x32xf32>
    %c1_137 = arith.constant 1 : index
    %c1_138 = arith.constant 1 : index
    %c1_139 = arith.constant 1 : index
    %c0_140 = arith.constant 0 : index
    %119 = vector.load %arg10[%c1_137, %c1_138, %c1_139, %c0_140] : memref<5x2x5x32xbf16, #tpu.memory_space<vmem>>, vector<4x1x4x32xbf16>
    %120 = vector.shape_cast %119 : vector<4x1x4x32xbf16> to vector<4x4x32xbf16>
    %121 = vector.shape_cast %120 : vector<4x4x32xbf16> to vector<16x32xbf16>
    %c2_141 = arith.constant 2 : index
    %c0_142 = arith.constant 0 : index
    %c0_143 = arith.constant 0 : index
    %122 = vector.load %arg7[%c2_141, %c0_142, %c0_143] : memref<3x32x32xbf16, #tpu.memory_space<vmem>>, vector<1x32x32xbf16>
    %123 = vector.shape_cast %122 : vector<1x32x32xbf16> to vector<32x32xbf16>
    %cst_144 = arith.constant dense<0.000000e+00> : vector<16x32xf32>
    %124 = tpu.matmul %121, %123, %cst_144 {dimension_numbers = #tpu.dot_dimension_numbers<[1], [0], [0], [1], [0, 0, 1, 1], [], []>} : vector<16x32xbf16>, vector<32x32xbf16>, vector<16x32xf32> -> vector<16x32xf32>
    %125 = arith.addf %118, %124 : vector<16x32xf32>
    %c0_145 = arith.constant 0 : index
    %c0_146 = arith.constant 0 : index
    %126 = vector.load %arg8[%c0_145, %c0_146] : memref<1x32xf32, #tpu.memory_space<vmem>>, vector<1x32xf32>
    %127 = vector.broadcast %126 : vector<1x32xf32> to vector<16x32xf32>
    %128 = arith.addf %125, %127 : vector<16x32xf32>
    %cst_147 = arith.constant 0.000000e+00 : f32
    %129 = vector.broadcast %cst_147 : f32 to vector<16x32xf32>
    %130 = arith.maximumf %128, %129 : vector<16x32xf32>
    %c0_148 = arith.constant 0 : index
    %c0_149 = arith.constant 0 : index
    %c0_150 = arith.constant 0 : index
    %131 = vector.load %arg9[%c0_148, %c0_149, %c0_150] : memref<1x16x32xf32, #tpu.memory_space<vmem>>, vector<1x16x32xf32>
    %132 = vector.shape_cast %131 : vector<1x16x32xf32> to vector<16x32xf32>
    %133 = vector.shape_cast %130 : vector<16x32xf32> to vector<1x16x32xf32>
    tpu.vector_store %arg9[%c0_148, %c0_149, %c0_150], %133 {strides = array<i32>} : memref<1x16x32xf32, #tpu.memory_space<vmem>>, vector<1x16x32xf32>,
    return
  }
  func.func @transform_0(%arg0: i32) -> (i32, i32, i32, i32, i32) {
    %c0_i32 = arith.constant 0 : i32
    %c0_i32_0 = arith.constant 0 : i32
    %c0_i32_1 = arith.constant 0 : i32
    %c0_i32_2 = arith.constant 0 : i32
    %c0_i32_3 = arith.constant 0 : i32
    return %arg0, %c0_i32, %c0_i32_0, %c0_i32_1, %c0_i32_2 : i32, i32, i32, i32, i32
  }
  func.func @transform_1(%arg0: i32) -> (i32, i32, i32) {
    %c0_i32 = arith.constant 0 : i32
    %c0_i32_0 = arith.constant 0 : i32
    %c0_i32_1 = arith.constant 0 : i32
    %c0_i32_2 = arith.constant 0 : i32
    return %c0_i32, %c0_i32_0, %c0_i32_1 : i32, i32, i32
  }
  func.func @transform_2(%arg0: i32) -> (i32, i32, i32) {
    %c0_i32 = arith.constant 0 : i32
    %c0_i32_0 = arith.constant 0 : i32
    %c0_i32_1 = arith.constant 0 : i32
    %c0_i32_2 = arith.constant 0 : i32
    return %c0_i32, %c0_i32_0, %c0_i32_1 : i32, i32, i32
  }
  func.func @transform_3(%arg0: i32) -> (i32, i32, i32) {
    %c0_i32 = arith.constant 0 : i32
    %c0_i32_0 = arith.constant 0 : i32
    %c0_i32_1 = arith.constant 0 : i32
    %c0_i32_2 = arith.constant 0 : i32
    return %c0_i32, %c0_i32_0, %c0_i32_1 : i32, i32, i32
  }
  func.func @transform_4(%arg0: i32) -> (i32, i32) {
    %c0_i32 = arith.constant 0 : i32
    %c0_i32_0 = arith.constant 0 : i32
    %c0_i32_1 = arith.constant 0 : i32
    return %c0_i32, %c0_i32_0 : i32, i32
  }
  func.func @transform_5(%arg0: i32) -> (i32, i32, i32) {
    %c0_i32 = arith.constant 0 : i32
    %c0_i32_0 = arith.constant 0 : i32
    %c0_i32_1 = arith.constant 0 : i32
    %c0_i32_2 = arith.constant 0 : i32
    return %c0_i32, %c0_i32_0, %c0_i32_1 : i32, i32, i32
  }
  func.func @transform_6(%arg0: i32) -> (i32, i32, i32) {
    %c0_i32 = arith.constant 0 : i32
    %c0_i32_0 = arith.constant 0 : i32
    %c0_i32_1 = arith.constant 0 : i32
    %c0_i32_2 = arith.constant 0 : i32
    return %c0_i32, %c0_i32_0, %c0_i32_1 : i32, i32, i32
  }
  func.func @transform_7(%arg0: i32) -> (i32, i32) {
    %c0_i32 = arith.constant 0 : i32
    %c0_i32_0 = arith.constant 0 : i32
    %c0_i32_1 = arith.constant 0 : i32
    return %c0_i32, %c0_i32_0 : i32, i32
  }
  func.func @transform_8(%arg0: i32) -> (i32, i32, i32) {
    %c0_i32 = arith.constant 0 : i32
    %c0_i32_0 = arith.constant 0 : i32
    %c0_i32_1 = arith.constant 0 : i32
    return %arg0, %c0_i32, %c0_i32_0 : i32, i32, i32
  }
}

</mosaic_0001>

<llo_original>
// kernel: tpu_custom_call.1
$region0: #{tpu_custom_call.1}
  #allocation0 [shape = 'u32[]', space=smem, size = 0x4, offset = 0x4, fixed_abs, tag = 'smem constant byte address 0x4 - core index']
  #allocation1 [shape = 'u32[144,128]{1,0:T(1,128)}', space=vmem, size = 0x12000, scoped, tag = 'internal scratch']
  #allocation2 [shape = 'bf16[5,2,5,32]{3,2,1,0:T(8,128)(2,1)}', space=vmem, size = 0x5000, scoped, tag = 'scratch operand']
  %s0 = inlined_call_operand.vmem [shape: bf16[2,9,2,5,16], index: 0, kind: input, shape index: {}]
  %s1 = inlined_call_operand.vmem [shape: bf16[3,12,16], index: 1, kind: input, shape index: {}]
  %s2 = inlined_call_operand.vmem [shape: bf16[3,8,16], index: 2, kind: input, shape index: {}]
  %s3 = inlined_call_operand.vmem [shape: bf16[3,4,16], index: 3, kind: input, shape index: {}]
  %s4 = inlined_call_operand.vmem [shape: f32[1,16], index: 4, kind: input, shape index: {}]
  %s5 = inlined_call_operand.vmem [shape: bf16[3,16,32], index: 5, kind: input, shape index: {}]
  %s6 = inlined_call_operand.vmem [shape: bf16[3,32,32], index: 6, kind: input, shape index: {}]
  %s7 = inlined_call_operand.vmem [shape: f32[1,32], index: 7, kind: input, shape index: {}]
  %s8 = inlined_call_operand.hbm [shape: f32[2,16,32], index: 8, kind: output, shape index: {}]
  %s9 = sld [smem:[#allocation0]]
  $region65: #{tpu_custom_call.1} parent=0
    _
  %s11 = ssub.s32 1, %s9
  %s12 = scalar_select 0, %s11, %s9
  $region1: #{tpu_custom_call.1} parent=0
    #allocation3 [shape = 'u8[16384]{0}', space=vmem, size = 0x4000, scoped, tag = 'output window, operand 0']
    #allocation4 [shape = 's32[2]{0}', space=sflag, size = 0x8, scoped, tag = 'scoped memory for tpu_custom_call.1']
    %13 = vsyncpa [#allocation4], 0
    %s14 = scalar_lea.sflag [#allocation4], 1
    %15 = vsyncpa %s14, 0
    loop: start=0, step=1, limit=4
    $region2: #{tpu_custom_call.1} parent=1 // loop_pre_header
      _
    $region3: #{tpu_custom_call.1} parent=1 // loop_header
      %s17 = sphi 0, %s21
      %p18 = scmp.ge.s32.totalorder %s17, 4
      %s27 = sphi 0, %s29
      %s30 = sphi 0, %s27
      %s31 = sphi 0, %s30
      %s47 = sphi 0, %s31
      %s51 = sphi 0, %s51
      %s53 = sphi 0, %s51
      %s54 = sphi 0, %s53
      %s68 = sphi 0, %s54
      %s72 = sphi 0, %s72
      %s74 = sphi 0, %s72
      %s75 = sphi 0, %s74
      %s89 = sphi 0, %s75
      %s93 = sphi 0, %s93
      %s95 = sphi 0, %s93
      %s96 = sphi 0, %s95
      %s110 = sphi 0, %s96
      %s114 = sphi 0, %s114
      %s116 = sphi 0, %s114
      %s117 = sphi 0, %s116
      %s131 = sphi 0, %s117
      %s135 = sphi 0, %s135
      %s137 = sphi 0, %s135
      %s138 = sphi 0, %s137
      %s152 = sphi 0, %s138
      %s156 = sphi 0, %s156
      %s158 = sphi 0, %s156
      %s159 = sphi 0, %s158
      %s173 = sphi 0, %s159
      %s177 = sphi 0, %s177
      %s179 = sphi 0, %s177
      %s180 = sphi 0, %s179
      %s194 = sphi 0, %s180
      %s200 = sphi 0, %s202
      %s203 = sphi 0, %s200
      %s204 = sphi 0, %s203
      %s220 = sphi 0, %s204
    $region4: #{tpu_custom_call.1} parent=1 // loop_header_branch
      %20 = sbr.rel (%p18) target = $region8
    $region5: #{tpu_custom_call.1} parent=1 // loop_body
      %s22 = ssub.s32 %s17, 1
      %s23 = ssub.s32 %s17, 2
      %s24 = sadd.s32 %s17, 1
      %s25 = ssub.s32 %s17, %s24
      %p26 = scmp.eq.s32.totalorder %s25, 0
      %s28 = sadd.s32 %s27, 1
      %s29 = scalar_select %p26, %s27, %s28
      %p32 = pneg %p26
      %p33 = scmp.eq.s32.totalorder %s17, 1
      %p34 = por %p32, %p33
      %p35 = scmp.ne.s32.totalorder %s27, %s30
      %p36 = scmp.eq.s32.totalorder %s17, 0
      %p37 = por %p35, %p36
      %p38 = scmp.ne.s32.totalorder %s27, %s30
      %p39 = scmp.eq.s32.totalorder %s22, 1
      %p40 = por %p38, %p39
      %p41 = scmp.ne.s32.totalorder %s30, %s31
      %p42 = scmp.eq.s32.totalorder %s22, 0
      %p43 = por %p41, %p42
      %p44 = scmp.ne.s32.totalorder %s30, %s31
      %p45 = scmp.eq.s32.totalorder %s23, 1
      %p46 = por %p44, %p45
      %p48 = scmp.ne.s32.totalorder %s31, %s47
      %p49 = scmp.eq.s32.totalorder %s23, 0
      %p50 = por %p48, %p49
      %s52 = sadd.s32 %s51, 1
      %p55 = scmp.eq.s32.totalorder %s17, 1
      %p56 = scmp.ne.s32.totalorder %s51, %s53
      %p57 = scmp.eq.s32.totalorder %s17, 0
      %p58 = por %p56, %p57
      %p59 = scmp.ne.s32.totalorder %s51, %s53
      %p60 = scmp.eq.s32.totalorder %s22, 1
      %p61 = por %p59, %p60
      %p62 = scmp.ne.s32.totalorder %s53, %s54
      %p63 = scmp.eq.s32.totalorder %s22, 0
      %p64 = por %p62, %p63
      %p65 = scmp.ne.s32.totalorder %s53, %s54
      %p66 = scmp.eq.s32.totalorder %s23, 1
      %p67 = por %p65, %p66
      %p69 = scmp.ne.s32.totalorder %s54, %s68
      %p70 = scmp.eq.s32.totalorder %s23, 0
      %p71 = por %p69, %p70
      %s73 = sadd.s32 %s72, 1
      %p76 = scmp.eq.s32.totalorder %s17, 1
      %p77 = scmp.ne.s32.totalorder %s72, %s74
      %p78 = scmp.eq.s32.totalorder %s17, 0
      %p79 = por %p77, %p78
      %p80 = scmp.ne.s32.totalorder %s72, %s74
      %p81 = scmp.eq.s32.totalorder %s22, 1
      %p82 = por %p80, %p81
      %p83 = scmp.ne.s32.totalorder %s74, %s75
      %p84 = scmp.eq.s32.totalorder %s22, 0
      %p85 = por %p83, %p84
      %p86 = scmp.ne.s32.totalorder %s74, %s75
      %p87 = scmp.eq.s32.totalorder %s23, 1
      %p88 = por %p86, %p87
      %p90 = scmp.ne.s32.totalorder %s75, %s89
      %p91 = scmp.eq.s32.totalorder %s23, 0
      %p92 = por %p90, %p91
      %s94 = sadd.s32 %s93, 1
      %p97 = scmp.eq.s32.totalorder %s17, 1
      %p98 = scmp.ne.s32.totalorder %s93, %s95
      %p99 = scmp.eq.s32.totalorder %s17, 0
      %p100 = por %p98, %p99
      %p101 = scmp.ne.s32.totalorder %s93, %s95
      %p102 = scmp.eq.s32.totalorder %s22, 1
      %p103 = por %p101, %p102
      %p104 = scmp.ne.s32.totalorder %s95, %s96
      %p105 = scmp.eq.s32.totalorder %s22, 0
      %p106 = por %p104, %p105
      %p107 = scmp.ne.s32.totalorder %s95, %s96
      %p108 = scmp.eq.s32.totalorder %s23, 1
      %p109 = por %p107, %p108
      %p111 = scmp.ne.s32.totalorder %s96, %s110
      %p112 = scmp.eq.s32.totalorder %s23, 0
      %p113 = por %p111, %p112
      %s115 = sadd.s32 %s114, 1
      %p118 = scmp.eq.s32.totalorder %s17, 1
      %p119 = scmp.ne.s32.totalorder %s114, %s116
      %p120 = scmp.eq.s32.totalorder %s17, 0
      %p121 = por %p119, %p120
      %p122 = scmp.ne.s32.totalorder %s114, %s116
      %p123 = scmp.eq.s32.totalorder %s22, 1
      %p124 = por %p122, %p123
      %p125 = scmp.ne.s32.totalorder %s116, %s117
      %p126 = scmp.eq.s32.totalorder %s22, 0
      %p127 = por %p125, %p126
      %p128 = scmp.ne.s32.totalorder %s116, %s117
      %p129 = scmp.eq.s32.totalorder %s23, 1
      %p130 = por %p128, %p129
      %p132 = scmp.ne.s32.totalorder %s117, %s131
      %p133 = scmp.eq.s32.totalorder %s23, 0
      %p134 = por %p132, %p133
      %s136 = sadd.s32 %s135, 1
      %p139 = scmp.eq.s32.totalorder %s17, 1
      %p140 = scmp.ne.s32.totalorder %s135, %s137
      %p141 = scmp.eq.s32.totalorder %s17, 0
      %p142 = por %p140, %p141
      %p143 = scmp.ne.s32.totalorder %s135, %s137
      %p144 = scmp.eq.s32.totalorder %s22, 1
      %p145 = por %p143, %p144
      %p146 = scmp.ne.s32.totalorder %s137, %s138
      %p147 = scmp.eq.s32.totalorder %s22, 0
      %p148 = por %p146, %p147
      %p149 = scmp.ne.s32.totalorder %s137, %s138
      %p150 = scmp.eq.s32.totalorder %s23, 1
      %p151 = por %p149, %p150
      %p153 = scmp.ne.s32.totalorder %s138, %s152
      %p154 = scmp.eq.s32.totalorder %s23, 0
      %p155 = por %p153, %p154
      %s157 = sadd.s32 %s156, 1
      %p160 = scmp.eq.s32.totalorder %s17, 1
      %p161 = scmp.ne.s32.totalorder %s156, %s158
      %p162 = scmp.eq.s32.totalorder %s17, 0
      %p163 = por %p161, %p162
      %p164 = scmp.ne.s32.totalorder %s156, %s158
      %p165 = scmp.eq.s32.totalorder %s22, 1
      %p166 = por %p164, %p165
      %p167 = scmp.ne.s32.totalorder %s158, %s159
      %p168 = scmp.eq.s32.totalorder %s22, 0
      %p169 = por %p167, %p168
      %p170 = scmp.ne.s32.totalorder %s158, %s159
      %p171 = scmp.eq.s32.totalorder %s23, 1
      %p172 = por %p170, %p171
      %p174 = scmp.ne.s32.totalorder %s159, %s173
      %p175 = scmp.eq.s32.totalorder %s23, 0
      %p176 = por %p174, %p175
      %s178 = sadd.s32 %s177, 1
      %p181 = scmp.eq.s32.totalorder %s17, 1
      %p182 = scmp.ne.s32.totalorder %s177, %s179
      %p183 = scmp.eq.s32.totalorder %s17, 0
      %p184 = por %p182, %p183
      %p185 = scmp.ne.s32.totalorder %s177, %s179
      %p186 = scmp.eq.s32.totalorder %s22, 1
      %p187 = por %p185, %p186
      %p188 = scmp.ne.s32.totalorder %s179, %s180
      %p189 = scmp.eq.s32.totalorder %s22, 0
      %p190 = por %p188, %p189
      %p191 = scmp.ne.s32.totalorder %s179, %s180
      %p192 = scmp.eq.s32.totalorder %s23, 1
      %p193 = por %p191, %p192
      %p195 = scmp.ne.s32.totalorder %s180, %s194
      %p196 = scmp.eq.s32.totalorder %s23, 0
      %p197 = por %p195, %p196
      %s198 = ssub.s32 %s17, %s24
      %p199 = scmp.eq.s32.totalorder %s198, 0
      %s201 = sadd.s32 %s200, 1
      %s202 = scalar_select %p199, %s200, %s201
      %p205 = pneg %p199
      %p206 = scmp.eq.s32.totalorder %s17, 1
      %p207 = por %p205, %p206
      %p208 = scmp.ne.s32.totalorder %s200, %s203
      %p209 = scmp.eq.s32.totalorder %s17, 0
      %p210 = por %p208, %p209
      %p211 = scmp.ne.s32.totalorder %s200, %s203
      %p212 = scmp.eq.s32.totalorder %s22, 1
      %p213 = por %p211, %p212
      %p214 = scmp.ne.s32.totalorder %s203, %s204
      %p215 = scmp.eq.s32.totalorder %s22, 0
      %p216 = por %p214, %p215
      %p217 = scmp.ne.s32.totalorder %s203, %s204
      %p218 = scmp.eq.s32.totalorder %s23, 1
      %p219 = por %p217, %p218
      %p221 = scmp.ne.s32.totalorder %s204, %s220
      %p222 = scmp.eq.s32.totalorder %s23, 0
      %p223 = por %p221, %p222
      %p224 = scmp.le.s32.totalorder 1, %s17
      %p225 = scmp.lt.s32.totalorder %s17, 3
      %p226 = pnand %p224, %p225
      %p227 = pneg %p226
      // Predicated region
      $region9: #{tpu_custom_call.1} parent=5 // pred_check
        _
      $region10: #{tpu_custom_call.1} parent=5 // pred_check_branch
        %229 = sbr.rel (%p226) target = $region12
      $region11: #{tpu_custom_call.1} parent=5 // pred_region
        %s230 = ssub.s32 %s17, 1
        // Predicated region
        $region13: #{tpu_custom_call.1} parent=11 // pred_check
          %p231 = pneg %p64
        $region14: #{tpu_custom_call.1} parent=11 // pred_check_branch
          %233 = sbr.rel (%p231) target = $region16
        $region15: #{tpu_custom_call.1} parent=11 // pred_region
          _
        $region16: #{tpu_custom_call.1} parent=11 // pred_fallthru
          _
        // Predicated region
        $region17: #{tpu_custom_call.1} parent=11 // pred_check
          %p234 = pneg %p85
        $region18: #{tpu_custom_call.1} parent=11 // pred_check_branch
          %236 = sbr.rel (%p234) target = $region20
        $region19: #{tpu_custom_call.1} parent=11 // pred_region
          _
        $region20: #{tpu_custom_call.1} parent=11 // pred_fallthru
          _
        // Predicated region
        $region21: #{tpu_custom_call.1} parent=11 // pred_check
          %p237 = pneg %p106
        $region22: #{tpu_custom_call.1} parent=11 // pred_check_branch
          %239 = sbr.rel (%p237) target = $region24
        $region23: #{tpu_custom_call.1} parent=11 // pred_region
          _
        $region24: #{tpu_custom_call.1} parent=11 // pred_fallthru
          _
        // Predicated region
        $region25: #{tpu_custom_call.1} parent=11 // pred_check
          %p240 = pneg %p127
        $region26: #{tpu_custom_call.1} parent=11 // pred_check_branch
          %242 = sbr.rel (%p240) target = $region28
        $region27: #{tpu_custom_call.1} parent=11 // pred_region
          _
        $region28: #{tpu_custom_call.1} parent=11 // pred_fallthru
          _
        // Predicated region
        $region29: #{tpu_custom_call.1} parent=11 // pred_check
          %p243 = pneg %p148
        $region30: #{tpu_custom_call.1} parent=11 // pred_check_branch
          %245 = sbr.rel (%p243) target = $region32
        $region31: #{tpu_custom_call.1} parent=11 // pred_region
          _
        $region32: #{tpu_custom_call.1} parent=11 // pred_fallthru
          _
        // Predicated region
        $region33: #{tpu_custom_call.1} parent=11 // pred_check
          %p246 = pneg %p169
        $region34: #{tpu_custom_call.1} parent=11 // pred_check_branch
          %248 = sbr.rel (%p246) target = $region36
        $region35: #{tpu_custom_call.1} parent=11 // pred_region
          _
        $region36: #{tpu_custom_call.1} parent=11 // pred_fallthru
          _
        // Predicated region
        $region37: #{tpu_custom_call.1} parent=11 // pred_check
          %p249 = pneg %p190
        $region38: #{tpu_custom_call.1} parent=11 // pred_check_branch
          %251 = sbr.rel (%p249) target = $region40
        $region39: #{tpu_custom_call.1} parent=11 // pred_region
          _
        $region40: #{tpu_custom_call.1} parent=11 // pred_fallthru
          _
      $region12: #{tpu_custom_call.1} parent=5 // pred_fallthru
        _
      %p252 = scmp.lt.s32.totalorder %s17, 2
      // Predicated region
      $region41: #{tpu_custom_call.1} parent=5 // pred_check
        %p253 = pneg %p252
      $region42: #{tpu_custom_call.1} parent=5 // pred_check_branch
        %255 = sbr.rel (%p253) target = $region44
      $region43: #{tpu_custom_call.1} parent=5 // pred_region
        // Predicated region
        $region45: #{tpu_custom_call.1} parent=43 // pred_check
          %p256 = pneg %p37
        $region46: #{tpu_custom_call.1} parent=43 // pred_check_branch
          %258 = sbr.rel (%p256) target = $region48
        $region47: #{tpu_custom_call.1} parent=43 // pred_region
          %p259 = scmp.lt.s32.totalorder %s17, 1
          %s260 = scalar_select %p259, %s17, 1
          %s261 = smul.addr %s260, 18
          %s262 = smul.addr %s261, 4
          %s263 = scalar_lea.vmem %s0, %s262
        $region48: #{tpu_custom_call.1} parent=43 // pred_fallthru
          _
      $region44: #{tpu_custom_call.1} parent=5 // pred_fallthru
        _
      %p264 = scmp.le.s32.totalorder 1, %s17
      %p265 = scmp.lt.s32.totalorder %s17, 3
      %p266 = pnand %p264, %p265
      %p267 = pneg %p266
      // Predicated region
      $region49: #{tpu_custom_call.1} parent=5 // pred_check
        _
      $region50: #{tpu_custom_call.1} parent=5 // pred_check_branch
        %269 = sbr.rel (%p266) target = $region52
      $region51: #{tpu_custom_call.1} parent=5 // pred_region
        %s270 = ssub.s32 %s17, 1
        %p271 = scmp.lt.s32.totalorder %s22, 1
        %s272 = scalar_select %p271, %s22, 1
        %s273 = smul.addr %s272, 18
        %s274 = smul.addr %s273, 4
        %s275 = scalar_lea.vmem %s0, %s274
        %p276 = pneg %p43
        %p277 = pneg %p40
        %p278 = pneg %p64
        %p279 = pneg %p61
        %p280 = pneg %p85
        %p281 = pneg %p82
        %p282 = pneg %p106
        %p283 = pneg %p103
        %p284 = pneg %p127
        %p285 = pneg %p124
        %p286 = pneg %p148
        %p287 = pneg %p145
        %p288 = pneg %p169
        %p289 = pneg %p166
        %p290 = pneg %p190
        %p291 = pneg %p187
        %p292 = pneg %p216
        %p293 = pneg %p213
        %s294 = sand.u32 %s203, 1
        %s295 = scalar_lea.sflag [#allocation4], %s294
        %s296 = sand.u32 %s203, 1
        %s297 = smul.addr %s296, 16
        %s298 = scalar_lea.vmem [#allocation3], %s297
        %p299 = scmp.lt.s32.totalorder %s22, 1
        %s300 = scalar_select %p299, %s22, 1
        %s301 = smul.addr %s300, 18
        %s302 = smul.addr %s301, 4
        %s303 = scalar_lea.vmem %s0, %s302
        %vm305 = vcmask 256000
        %vm306 = vsmask.f32 2304
        %vm307 = vmand %vm305, %vm306
        %v308 = vld [vmem:[#allocation2] sm:$0x7]
        %v309 = vsel %vm307, 0, %v308
        %310 = vst [vmem:[#allocation2] sm:$0x7] %v309
        %v311 = vld [vmem:[#allocation2 + $0x4] sm:$0x7]
        %v312 = vsel %vm307, 0, %v311
        %313 = vst [vmem:[#allocation2 + $0x4] sm:$0x7] %v312
        %v314 = vld [vmem:[#allocation2 + $0x8] sm:$0x7]
        %v315 = vsel %vm307, 0, %v314
        %316 = vst [vmem:[#allocation2 + $0x8] sm:$0x7] %v315
        %v317 = vld [vmem:[#allocation2 + $0xc] sm:$0x7]
        %v318 = vsel %vm307, 0, %v317
        %319 = vst [vmem:[#allocation2 + $0xc] sm:$0x7] %v318
        %v320 = vld [vmem:[#allocation2 + $0x10] sm:$0x7]
        %v321 = vsel %vm307, 0, %v320
        %322 = vst [vmem:[#allocation2 + $0x10] sm:$0x7] %v321
        %v323 = vld [vmem:[#allocation2 + $0x14] sm:$0x7]
        %v324 = vsel %vm307, 0, %v323
        %325 = vst [vmem:[#allocation2 + $0x14] sm:$0x7] %v324
        %v326 = vld [vmem:[#allocation2 + $0x18] sm:$0x7]
        %v327 = vsel %vm307, 0, %v326
        %328 = vst [vmem:[#allocation2 + $0x18] sm:$0x7] %v327
        %v329 = vld [vmem:[#allocation2 + $0x1c] sm:$0x7]
        %v330 = vsel %vm307, 0, %v329
        %331 = vst [vmem:[#allocation2 + $0x1c] sm:$0x7] %v330
        %v332 = vld [vmem:[#allocation2 + $0x20] sm:$0x7]
        %v333 = vsel %vm307, 0, %v332
        %334 = vst [vmem:[#allocation2 + $0x20] sm:$0x7] %v333
        %v335 = vld [vmem:[#allocation2 + $0x24] sm:$0x7]
        %v336 = vsel %vm307, 0, %v335
        %337 = vst [vmem:[#allocation2 + $0x24] sm:$0x7] %v336
        %v338 = vld [vmem:[%s303] sm:$0x3]
        %v339 = vld [vmem:[%s303 + $0x8] sm:$0x3]
        %v340 = vld [vmem:[%s303 + $0x10] sm:$0x3]
        %v341 = vld [vmem:[%s303 + $0x18] sm:$0x3]
        %v342 = vld [vmem:[%s303 + $0x20] sm:$0x3]
        %v343 = vld [vmem:[%s303 + $0x28] sm:$0x3]
        %v344 = vld [vmem:[%s303 + $0x30] sm:$0x3]
        %v345 = vld [vmem:[%s303 + $0x38] sm:$0x3]
        %v346 = vld [vmem:[%s1] sm:$0xf]
        %v347 = vld [vmem:[%s1 + $0x4] sm:$0x3]
        %s348 = scalar_lea.vmem %s303, 4
        %v349 = vld [vmem:[%s348] sm:$0x3]
        %v350 = vld [vmem:[%s348 + $0x8] sm:$0x3]
        %v351 = vld [vmem:[%s348 + $0x10] sm:$0x3]
        %v352 = vld [vmem:[%s348 + $0x18] sm:$0x3]
        %v353 = vld [vmem:[%s348 + $0x20] sm:$0x3]
        %v354 = vld [vmem:[%s348 + $0x28] sm:$0x3]
        %v355 = vld [vmem:[%s348 + $0x30] sm:$0x3]
        %v356 = vld [vmem:[%s348 + $0x38] sm:$0x3]
        %s357 = scalar_lea.vmem %s1, 8
        %v358 = vld [vmem:[%s357] sm:$0xf]
        %v359 = vld [vmem:[%s357 + $0x4] sm:$0x3]
        %v368 = vcombine.low %v349, %v350
        %v369 = vcombine.low %v351, %v352
        %v371 = vunpack.c.l.s4 1983009808
        %v372 = vunpack.c.0.s8 %v371
        %v373 = vlaneseq
        %v374 = vshrl.u32 %v373, 7
        %v375 = vsub.s32 %v372, %v374
        %v376 = vrot.slane %v368, %v375
        %v378 = vunpack.c.l.s4 1983009808
        %v379 = vunpack.c.0.s8 %v378
        %v380 = vlaneseq
        %v381 = vshrl.u32 %v380, 7
        %v382 = vsub.s32 %v379, %v381
        %v383 = vrot.slane %v369, %v382
        %v384 = vcombine.low %v376, %v383
        %v385 = vcombine.low %v353, %v354
        %v386 = vcombine.low %v355, %v356
        %v388 = vunpack.c.l.s4 1983009808
        %v389 = vunpack.c.0.s8 %v388
        %v390 = vlaneseq
        %v391 = vshrl.u32 %v390, 7
        %v392 = vsub.s32 %v389, %v391
        %v393 = vrot.slane %v385, %v392
        %v395 = vunpack.c.l.s4 1983009808
        %v396 = vunpack.c.0.s8 %v395
        %v397 = vlaneseq
        %v398 = vshrl.u32 %v397, 7
        %v399 = vsub.s32 %v396, %v398
        %v400 = vrot.slane %v386, %v399
        %v401 = vcombine.low %v393, %v400
        %v404 = vunpack.c.l.b16 %v358
        %v405 = vunpack.c.l.b16 %v359
        %v406 = vpack.c.b16 %v405, %v404
        %vm407 = vcmask 97280
        %v409 = vsel %vm407, %v384, 0
        %v412 = vsel %vm407, %v401, 0
        %vm414 = vcmask 1045504
        %v416 = vsel %vm414, %v406, 0
        %418 = vmatprep.subr.bf16.mxu0 0
        %419 = vmatpush1.bf16.msra.mxu0 %v416
        %420 = vmatprep.subr.bf16.mxu0 0
        %421 = vmatpush1.bf16.msra.mxu0 0
        %422 = vmatprep.subr.bf16.mxu0 0
        %423 = vmatpush1.bf16.msra.mxu0 0
        %424 = vmatprep.subr.bf16.mxu0 0
        %425 = vmatpush1.bf16.msra.mxu0 0
        %426 = vmatprep.subr.bf16.mxu0 0
        %427 = vmatpush1.bf16.msra.mxu0 0
        %428 = vmatprep.subr.bf16.mxu0 0
        %429 = vmatpush1.bf16.msra.mxu0 0
        %430 = vmatprep.subr.bf16.mxu0 0
        %431 = vmatpush1.bf16.msra.mxu0 0
        %432 = vmatprep.subr.bf16.mxu0 0
        %433 = vmatpush1.bf16.msra.mxu0 0
        %434 = vmatprep.subr.bf16.mxu0 0
        %435 = vmatpush1.bf16.msra.mxu0 0
        %436 = vmatprep.subr.bf16.mxu0 0
        %437 = vmatpush1.bf16.msra.mxu0 0
        %438 = vmatprep.subr.bf16.mxu0 0
        %439 = vmatpush1.bf16.msra.mxu0 0
        %440 = vmatprep.subr.bf16.mxu0 0
        %441 = vmatpush1.bf16.msra.mxu0 0
        %442 = vmatprep.subr.bf16.mxu0 0
        %443 = vmatpush1.bf16.msra.mxu0 0
        %444 = vmatprep.subr.bf16.mxu0 0
        %445 = vmatpush1.bf16.msra.mxu0 0
        %446 = vmatprep.subr.bf16.mxu0 0
        %447 = vmatpush1.bf16.msra.mxu0 0
        %448 = vmatprep.subr.bf16.mxu0 0
        %449 = vmatpush1.bf16.msra.mxu0 0
        %450 = vmatprep.mubr.bf16.mxu0 0
        %451 = vmatmul.mubr.bf16.gmra.mrb[0].mxu0 %v409
        %v452 = vpop.f32.mrb[0].mxu0
        %v453 = vadd.f32 0.0, %v452
        %v454 = vpop.f32.mrb[0].mxu0
        %v455 = vpop.f32.mrb[0].mxu0
        %v456 = vadd.f32 0.0, %v455
        %v457 = vpop.f32.mrb[0].mxu0
        %458 = vmatprep.mubr.bf16.mxu0 0
        %459 = vmatmul.mubr.bf16.gmra.mrb[0].mxu0 %v412
        %v460 = vpop.f32.mrb[0].mxu0
        %v461 = vadd.f32 0.0, %v460
        %v462 = vpop.f32.mrb[0].mxu0
        %v463 = vpop.f32.mrb[0].mxu0
        %v464 = vadd.f32 0.0, %v463
        %v465 = vpop.f32.mrb[0].mxu0
        %466 = vdwg.mxu0
        %v475 = vcombine.low %v338, %v339
        %v476 = vcombine.low %v340, %v341
        %v478 = vunpack.c.l.s4 1983009808
        %v479 = vunpack.c.0.s8 %v478
        %v480 = vlaneseq
        %v481 = vshrl.u32 %v480, 7
        %v482 = vsub.s32 %v479, %v481
        %v483 = vrot.slane %v475, %v482
        %v485 = vunpack.c.l.s4 1983009808
        %v486 = vunpack.c.0.s8 %v485
        %v487 = vlaneseq
        %v488 = vshrl.u32 %v487, 7
        %v489 = vsub.s32 %v486, %v488
        %v490 = vrot.slane %v476, %v489
        %v491 = vcombine.low %v483, %v490
        %v492 = vcombine.low %v342, %v343
        %v493 = vcombine.low %v344, %v345
        %v495 = vunpack.c.l.s4 1983009808
        %v496 = vunpack.c.0.s8 %v495
        %v497 = vlaneseq
        %v498 = vshrl.u32 %v497, 7
        %v499 = vsub.s32 %v496, %v498
        %v500 = vrot.slane %v492, %v499
        %v502 = vunpack.c.l.s4 1983009808
        %v503 = vunpack.c.0.s8 %v502
        %v504 = vlaneseq
        %v505 = vshrl.u32 %v504, 7
        %v506 = vsub.s32 %v503, %v505
        %v507 = vrot.slane %v493, %v506
        %v508 = vcombine.low %v500, %v507
        %v511 = vunpack.c.l.b16 %v346
        %v512 = vunpack.c.l.b16 %v347
        %v513 = vpack.c.b16 %v512, %v511
        %v515 = vsel %vm407, %v491, 0
        %v518 = vsel %vm407, %v508, 0
        %v521 = vsel %vm414, %v513, 0
        %523 = vmatprep.subr.bf16.mxu0 0
        %524 = vmatpush1.bf16.msra.mxu0 %v521
        %525 = vmatprep.subr.bf16.mxu0 0
        %526 = vmatpush1.bf16.msra.mxu0 0
        %527 = vmatprep.subr.bf16.mxu0 0
        %528 = vmatpush1.bf16.msra.mxu0 0
        %529 = vmatprep.subr.bf16.mxu0 0
        %530 = vmatpush1.bf16.msra.mxu0 0
        %531 = vmatprep.subr.bf16.mxu0 0
        %532 = vmatpush1.bf16.msra.mxu0 0
        %533 = vmatprep.subr.bf16.mxu0 0
        %534 = vmatpush1.bf16.msra.mxu0 0
        %535 = vmatprep.subr.bf16.mxu0 0
        %536 = vmatpush1.bf16.msra.mxu0 0
        %537 = vmatprep.subr.bf16.mxu0 0
        %538 = vmatpush1.bf16.msra.mxu0 0
        %539 = vmatprep.subr.bf16.mxu0 0
        %540 = vmatpush1.bf16.msra.mxu0 0
        %541 = vmatprep.subr.bf16.mxu0 0
        %542 = vmatpush1.bf16.msra.mxu0 0
        %543 = vmatprep.subr.bf16.mxu0 0
        %544 = vmatpush1.bf16.msra.mxu0 0
        %545 = vmatprep.subr.bf16.mxu0 0
        %546 = vmatpush1.bf16.msra.mxu0 0
        %547 = vmatprep.subr.bf16.mxu0 0
        %548 = vmatpush1.bf16.msra.mxu0 0
        %549 = vmatprep.subr.bf16.mxu0 0
        %550 = vmatpush1.bf16.msra.mxu0 0
        %551 = vmatprep.subr.bf16.mxu0 0
        %552 = vmatpush1.bf16.msra.mxu0 0
        %553 = vmatprep.subr.bf16.mxu0 0
        %554 = vmatpush1.bf16.msra.mxu0 0
        %555 = vmatprep.mubr.bf16.mxu0 0
        %556 = vmatmul.mubr.bf16.gmra.mrb[0].mxu0 %v515
        %v557 = vpop.f32.mrb[0].mxu0
        %v558 = vadd.f32 %v453, %v557
        %v559 = vpop.f32.mrb[0].mxu0
        %v560 = vpop.f32.mrb[0].mxu0
        %v561 = vadd.f32 %v456, %v560
        %v562 = vpop.f32.mrb[0].mxu0
        %563 = vmatprep.mubr.bf16.mxu0 0
        %564 = vmatmul.mubr.bf16.gmra.mrb[0].mxu0 %v518
        %v565 = vpop.f32.mrb[0].mxu0
        %v566 = vadd.f32 %v461, %v565
        %v567 = vpop.f32.mrb[0].mxu0
        %v568 = vpop.f32.mrb[0].mxu0
        %v569 = vadd.f32 %v464, %v568
        %v570 = vpop.f32.mrb[0].mxu0
        %571 = vdwg.mxu0
        %s572 = scalar_lea.vmem %s303, 8
        %v573 = vld [vmem:[%s572] sm:$0x3]
        %v574 = vld [vmem:[%s572 + $0x8] sm:$0x3]
        %v575 = vld [vmem:[%s572 + $0x10] sm:$0x3]
        %v576 = vld [vmem:[%s572 + $0x18] sm:$0x3]
        %v577 = vld [vmem:[%s572 + $0x20] sm:$0x3]
        %v578 = vld [vmem:[%s572 + $0x28] sm:$0x3]
        %v579 = vld [vmem:[%s572 + $0x30] sm:$0x3]
        %v580 = vld [vmem:[%s572 + $0x38] sm:$0x3]
        %s581 = scalar_lea.vmem %s1, 16
        %v582 = vld [vmem:[%s581] sm:$0xf]
        %v583 = vld [vmem:[%s581 + $0x4] sm:$0x3]
        %v592 = vcombine.low %v573, %v574
        %v593 = vcombine.low %v575, %v576
        %v595 = vunpack.c.l.s4 1983009808
        %v596 = vunpack.c.0.s8 %v595
        %v597 = vlaneseq
        %v598 = vshrl.u32 %v597, 7
        %v599 = vsub.s32 %v596, %v598
        %v600 = vrot.slane %v592, %v599
        %v602 = vunpack.c.l.s4 1983009808
        %v603 = vunpack.c.0.s8 %v602
        %v604 = vlaneseq
        %v605 = vshrl.u32 %v604, 7
        %v606 = vsub.s32 %v603, %v605
        %v607 = vrot.slane %v593, %v606
        %v608 = vcombine.low %v600, %v607
        %v609 = vcombine.low %v577, %v578
        %v610 = vcombine.low %v579, %v580
        %v612 = vunpack.c.l.s4 1983009808
        %v613 = vunpack.c.0.s8 %v612
        %v614 = vlaneseq
        %v615 = vshrl.u32 %v614, 7
        %v616 = vsub.s32 %v613, %v615
        %v617 = vrot.slane %v609, %v616
        %v619 = vunpack.c.l.s4 1983009808
        %v620 = vunpack.c.0.s8 %v619
        %v621 = vlaneseq
        %v622 = vshrl.u32 %v621, 7
        %v623 = vsub.s32 %v620, %v622
        %v624 = vrot.slane %v610, %v623
        %v625 = vcombine.low %v617, %v624
        %v628 = vunpack.c.l.b16 %v582
        %v629 = vunpack.c.l.b16 %v583
        %v630 = vpack.c.b16 %v629, %v628
        %v632 = vsel %vm407, %v608, 0
        %v635 = vsel %vm407, %v625, 0
        %v638 = vsel %vm414, %v630, 0
        %640 = vmatprep.subr.bf16.mxu0 0
        %641 = vmatpush1.bf16.msra.mxu0 %v638
        %642 = vmatprep.subr.bf16.mxu0 0
        %643 = vmatpush1.bf16.msra.mxu0 0
        %644 = vmatprep.subr.bf16.mxu0 0
        %645 = vmatpush1.bf16.msra.mxu0 0
        %646 = vmatprep.subr.bf16.mxu0 0
        %647 = vmatpush1.bf16.msra.mxu0 0
        %648 = vmatprep.subr.bf16.mxu0 0
        %649 = vmatpush1.bf16.msra.mxu0 0
        %650 = vmatprep.subr.bf16.mxu0 0
        %651 = vmatpush1.bf16.msra.mxu0 0
        %652 = vmatprep.subr.bf16.mxu0 0
        %653 = vmatpush1.bf16.msra.mxu0 0
        %654 = vmatprep.subr.bf16.mxu0 0
        %655 = vmatpush1.bf16.msra.mxu0 0
        %656 = vmatprep.subr.bf16.mxu0 0
        %657 = vmatpush1.bf16.msra.mxu0 0
        %658 = vmatprep.subr.bf16.mxu0 0
        %659 = vmatpush1.bf16.msra.mxu0 0
        %660 = vmatprep.subr.bf16.mxu0 0
        %661 = vmatpush1.bf16.msra.mxu0 0
        %662 = vmatprep.subr.bf16.mxu0 0
        %663 = vmatpush1.bf16.msra.mxu0 0
        %664 = vmatprep.subr.bf16.mxu0 0
        %665 = vmatpush1.bf16.msra.mxu0 0
        %666 = vmatprep.subr.bf16.mxu0 0
        %667 = vmatpush1.bf16.msra.mxu0 0
        %668 = vmatprep.subr.bf16.mxu0 0
        %669 = vmatpush1.bf16.msra.mxu0 0
        %670 = vmatprep.subr.bf16.mxu0 0
        %671 = vmatpush1.bf16.msra.mxu0 0
        %672 = vmatprep.mubr.bf16.mxu0 0
        %673 = vmatmul.mubr.bf16.gmra.mrb[0].mxu0 %v632
        %v674 = vpop.f32.mrb[0].mxu0
        %v675 = vadd.f32 0.0, %v674
        %v676 = vpop.f32.mrb[0].mxu0
        %v677 = vpop.f32.mrb[0].mxu0
        %v678 = vadd.f32 0.0, %v677
        %v679 = vpop.f32.mrb[0].mxu0
        %680 = vmatprep.mubr.bf16.mxu0 0
        %681 = vmatmul.mubr.bf16.gmra.mrb[0].mxu0 %v635
        %v682 = vpop.f32.mrb[0].mxu0
        %v683 = vadd.f32 0.0, %v682
        %v684 = vpop.f32.mrb[0].mxu0
        %v685 = vpop.f32.mrb[0].mxu0
        %v686 = vadd.f32 0.0, %v685
        %v687 = vpop.f32.mrb[0].mxu0
        %688 = vdwg.mxu0
        %v689 = vadd.f32 %v558, %v675
        %v690 = vadd.f32 %v561, %v678
        %v691 = vadd.f32 %v566, %v683
        %v692 = vadd.f32 %v569, %v686
        %v693 = vld [vmem:[%s4] sm:$0x1]
        %v695 = vlaneseq
        %v696 = vshrl.u32 %v695, 7
        %v697 = vsub.s32 0, %v696
        %v698 = vrot.slane %v693, %v697
        %v700 = vadd.f32 %v689, %v698
        %v701 = vadd.f32 %v690, %v698
        %v702 = vadd.f32 %v691, %v698
        %v703 = vadd.f32 %v692, %v698
        %v704 = vmax.f32 %v700, 0.0
        %v705 = vmax.f32 %v701, 0.0
        %v706 = vmax.f32 %v702, 0.0
        %v707 = vmax.f32 %v703, 0.0
        %v708 = vpack.c.bf16 %v705, %v704
        %v709 = vpack.c.bf16 %v707, %v706
        %v712 = vcombine.high %v708, %v708
        %v714 = vunpack.c.l.s4 1983009808
        %v715 = vunpack.c.0.s8 %v714
        %v716 = vlaneseq
        %v717 = vshrl.u32 %v716, 7
        %v718 = vsub.s32 %v715, %v717
        %v719 = vrot.slane %v708, %v718
        %v721 = vunpack.c.l.s4 1983009808
        %v722 = vunpack.c.0.s8 %v721
        %v723 = vlaneseq
        %v724 = vshrl.u32 %v723, 7
        %v725 = vsub.s32 %v722, %v724
        %v726 = vrot.slane %v712, %v725
        %v727 = vcombine.high %v719, %v719
        %v728 = vcombine.high %v726, %v726
        %v729 = vcombine.high %v709, %v709
        %v731 = vunpack.c.l.s4 1983009808
        %v732 = vunpack.c.0.s8 %v731
        %v733 = vlaneseq
        %v734 = vshrl.u32 %v733, 7
        %v735 = vsub.s32 %v732, %v734
        %v736 = vrot.slane %v709, %v735
        %v738 = vunpack.c.l.s4 1983009808
        %v739 = vunpack.c.0.s8 %v738
        %v740 = vlaneseq
        %v741 = vshrl.u32 %v740, 7
        %v742 = vsub.s32 %v739, %v741
        %v743 = vrot.slane %v729, %v742
        %v744 = vcombine.high %v736, %v736
        %v745 = vcombine.high %v743, %v743
        %v747 = vunpack.c.l.s4 1983009808
        %v748 = vunpack.c.0.s8 %v747
        %v749 = vlaneseq
        %v750 = vshrl.u32 %v749, 7
        %v751 = vsub.s32 %v748, %v750
        %v752 = vrot.slane %v719, %v751
        %v754 = vunpack.c.l.s4 1983009808
        %v755 = vunpack.c.0.s8 %v754
        %v756 = vlaneseq
        %v757 = vshrl.u32 %v756, 7
        %v758 = vsub.s32 %v755, %v757
        %v759 = vrot.slane %v727, %v758
        %v761 = vunpack.c.l.s4 1983009808
        %v762 = vunpack.c.0.s8 %v761
        %v763 = vlaneseq
        %v764 = vshrl.u32 %v763, 7
        %v765 = vsub.s32 %v762, %v764
        %v766 = vrot.slane %v726, %v765
        %v768 = vunpack.c.l.s4 1983009808
        %v769 = vunpack.c.0.s8 %v768
        %v770 = vlaneseq
        %v771 = vshrl.u32 %v770, 7
        %v772 = vsub.s32 %v769, %v771
        %v773 = vrot.slane %v728, %v772
        %v775 = vunpack.c.l.s4 1983009808
        %v776 = vunpack.c.0.s8 %v775
        %v777 = vlaneseq
        %v778 = vshrl.u32 %v777, 7
        %v779 = vsub.s32 %v776, %v778
        %v780 = vrot.slane %v736, %v779
        %v782 = vunpack.c.l.s4 1983009808
        %v783 = vunpack.c.0.s8 %v782
        %v784 = vlaneseq
        %v785 = vshrl.u32 %v784, 7
        %v786 = vsub.s32 %v783, %v785
        %v787 = vrot.slane %v744, %v786
        %v789 = vunpack.c.l.s4 1983009808
        %v790 = vunpack.c.0.s8 %v789
        %v791 = vlaneseq
        %v792 = vshrl.u32 %v791, 7
        %v793 = vsub.s32 %v790, %v792
        %v794 = vrot.slane %v743, %v793
        %v796 = vunpack.c.l.s4 1983009808
        %v797 = vunpack.c.0.s8 %v796
        %v798 = vlaneseq
        %v799 = vshrl.u32 %v798, 7
        %v800 = vsub.s32 %v797, %v799
        %v801 = vrot.slane %v745, %v800
        %v803 = vshrl.u32 %v752, 16
        %v805 = vrot.slane %v803, 7
        %v806 = vshll.u32 %v752, 16
        %v808 = vor.u32 %v805, %v806
        %v810 = vshrl.u32 %v759, 16
        %v812 = vrot.slane %v810, 7
        %v813 = vshll.u32 %v759, 16
        %v815 = vor.u32 %v812, %v813
        %v817 = vshrl.u32 %v766, 16
        %v819 = vrot.slane %v817, 7
        %v820 = vshll.u32 %v766, 16
        %v822 = vor.u32 %v819, %v820
        %v824 = vshrl.u32 %v773, 16
        %v826 = vrot.slane %v824, 7
        %v827 = vshll.u32 %v773, 16
        %v829 = vor.u32 %v826, %v827
        %v831 = vshrl.u32 %v780, 16
        %v833 = vrot.slane %v831, 7
        %v834 = vshll.u32 %v780, 16
        %v836 = vor.u32 %v833, %v834
        %v838 = vshrl.u32 %v787, 16
        %v840 = vrot.slane %v838, 7
        %v841 = vshll.u32 %v787, 16
        %v843 = vor.u32 %v840, %v841
        %v845 = vshrl.u32 %v794, 16
        %v847 = vrot.slane %v845, 7
        %v848 = vshll.u32 %v794, 16
        %v850 = vor.u32 %v847, %v848
        %v852 = vshrl.u32 %v801, 16
        %v854 = vrot.slane %v852, 7
        %v855 = vshll.u32 %v801, 16
        %v857 = vor.u32 %v854, %v855
        %s866 = scalar_lea.vmem [#allocation2], 8
        %vm867 = vcmask 124928
        %vm868 = vsmask.f32 2306
        %vm869 = vmand %vm867, %vm868
        %v870 = vld [vmem:[%s866] sm:$0x7]
        %v871 = vsel %vm869, %v808, %v870
        %872 = vst [vmem:[%s866] sm:$0x7] %v871
        %v873 = vld [vmem:[%s866 + $0x4] sm:$0x7]
        %v874 = vsel %vm869, %v815, %v873
        %875 = vst [vmem:[%s866 + $0x4] sm:$0x7] %v874
        %v876 = vld [vmem:[%s866 + $0x8] sm:$0x7]
        %v877 = vsel %vm869, %v822, %v876
        %878 = vst [vmem:[%s866 + $0x8] sm:$0x7] %v877
        %v879 = vld [vmem:[%s866 + $0xc] sm:$0x7]
        %v880 = vsel %vm869, %v829, %v879
        %881 = vst [vmem:[%s866 + $0xc] sm:$0x7] %v880
        %v882 = vld [vmem:[%s866 + $0x10] sm:$0x7]
        %v883 = vsel %vm869, %v836, %v882
        %884 = vst [vmem:[%s866 + $0x10] sm:$0x7] %v883
        %v885 = vld [vmem:[%s866 + $0x14] sm:$0x7]
        %v886 = vsel %vm869, %v843, %v885
        %887 = vst [vmem:[%s866 + $0x14] sm:$0x7] %v886
        %v888 = vld [vmem:[%s866 + $0x18] sm:$0x7]
        %v889 = vsel %vm869, %v850, %v888
        %890 = vst [vmem:[%s866 + $0x18] sm:$0x7] %v889
        %v891 = vld [vmem:[%s866 + $0x1c] sm:$0x7]
        %v892 = vsel %vm869, %v857, %v891
        %893 = vst [vmem:[%s866 + $0x1c] sm:$0x7] %v892
        %v894 = vld [vmem:[%s303] sm:$0x3]
        %v895 = vld [vmem:[%s303 + $0x8] sm:$0x3]
        %v896 = vld [vmem:[%s303 + $0x10] sm:$0x3]
        %v897 = vld [vmem:[%s303 + $0x18] sm:$0x3]
        %v898 = vld [vmem:[%s303 + $0x20] sm:$0x3]
        %v899 = vld [vmem:[%s303 + $0x28] sm:$0x3]
        %v900 = vld [vmem:[%s303 + $0x30] sm:$0x3]
        %v901 = vld [vmem:[%s303 + $0x38] sm:$0x3]
        %v902 = vld [vmem:[%s2] sm:$0xf]
        %v903 = vld [vmem:[%s303] sm:$0x7]
        %v904 = vld [vmem:[%s303 + $0x8] sm:$0x7]
        %v905 = vld [vmem:[%s303 + $0x10] sm:$0x7]
        %v906 = vld [vmem:[%s303 + $0x18] sm:$0x7]
        %v907 = vld [vmem:[%s303 + $0x20] sm:$0x7]
        %v908 = vld [vmem:[%s303 + $0x28] sm:$0x7]
        %v909 = vld [vmem:[%s303 + $0x30] sm:$0x7]
        %v910 = vld [vmem:[%s303 + $0x38] sm:$0x7]
        %v920 = vunpack.c.l.s4 1983009808
        %v921 = vunpack.c.0.s8 %v920
        %v922 = vlaneseq
        %v923 = vshrl.u32 %v922, 7
        %v924 = vsub.s32 %v921, %v923
        %v925 = vrot.slane %v903, %v924
        %v926 = vcombine.high %v925, %v925
        %v928 = vunpack.c.l.s4 1983009808
        %v929 = vunpack.c.0.s8 %v928
        %v930 = vlaneseq
        %v931 = vshrl.u32 %v930, 7
        %v932 = vsub.s32 %v929, %v931
        %v933 = vrot.slane %v904, %v932
        %v934 = vcombine.high %v933, %v933
        %v936 = vunpack.c.l.s4 1983009808
        %v937 = vunpack.c.0.s8 %v936
        %v938 = vlaneseq
        %v939 = vshrl.u32 %v938, 7
        %v940 = vsub.s32 %v937, %v939
        %v941 = vrot.slane %v905, %v940
        %v942 = vcombine.high %v941, %v941
        %v944 = vunpack.c.l.s4 1983009808
        %v945 = vunpack.c.0.s8 %v944
        %v946 = vlaneseq
        %v947 = vshrl.u32 %v946, 7
        %v948 = vsub.s32 %v945, %v947
        %v949 = vrot.slane %v906, %v948
        %v950 = vcombine.high %v949, %v949
        %v952 = vunpack.c.l.s4 1983009808
        %v953 = vunpack.c.0.s8 %v952
        %v954 = vlaneseq
        %v955 = vshrl.u32 %v954, 7
        %v956 = vsub.s32 %v953, %v955
        %v957 = vrot.slane %v907, %v956
        %v958 = vcombine.high %v957, %v957
        %v960 = vunpack.c.l.s4 1983009808
        %v961 = vunpack.c.0.s8 %v960
        %v962 = vlaneseq
        %v963 = vshrl.u32 %v962, 7
        %v964 = vsub.s32 %v961, %v963
        %v965 = vrot.slane %v908, %v964
        %v966 = vcombine.high %v965, %v965
        %v968 = vunpack.c.l.s4 1983009808
        %v969 = vunpack.c.0.s8 %v968
        %v970 = vlaneseq
        %v971 = vshrl.u32 %v970, 7
        %v972 = vsub.s32 %v969, %v971
        %v973 = vrot.slane %v909, %v972
        %v974 = vcombine.high %v973, %v973
        %v976 = vunpack.c.l.s4 1983009808
        %v977 = vunpack.c.0.s8 %v976
        %v978 = vlaneseq
        %v979 = vshrl.u32 %v978, 7
        %v980 = vsub.s32 %v977, %v979
        %v981 = vrot.slane %v910, %v980
        %v982 = vcombine.high %v981, %v981
        %vm983 = vsmask.f32 1280
        %vm984 = vsmask.f32 3336
        %vm985 = vmor %vm983, %vm984
        %vm986 = vsmask.f32 5392
        %vm987 = vmor %vm985, %vm986
        %vm988 = vsmask.f32 7448
        %vm989 = vmor %vm987, %vm988
        %v991 = vshrl.u32 %v925, 16
        %v993 = vrot.slane %v991, 6
        %v994 = vshll.u32 %v925, 16
        %v996 = vrot.slane %v994, 7
        %v997 = vor.u32 %v993, %v996
        %v998 = vrot.slane %v997, 2
        %v1000 = vshll.u32 %v926, 16
        %v1002 = vrot.slane %v1000, 7
        %v1003 = vsel %vm989, %v998, %v1002
        %v1005 = vshrl.u32 %v933, 16
        %v1007 = vrot.slane %v1005, 6
        %v1008 = vshll.u32 %v933, 16
        %v1010 = vrot.slane %v1008, 7
        %v1011 = vor.u32 %v1007, %v1010
        %v1012 = vrot.slane %v1011, 2
        %v1014 = vshll.u32 %v934, 16
        %v1016 = vrot.slane %v1014, 7
        %v1017 = vsel %vm989, %v1012, %v1016
        %v1019 = vshrl.u32 %v941, 16
        %v1021 = vrot.slane %v1019, 6
        %v1022 = vshll.u32 %v941, 16
        %v1024 = vrot.slane %v1022, 7
        %v1025 = vor.u32 %v1021, %v1024
        %v1026 = vrot.slane %v1025, 2
        %v1028 = vshll.u32 %v942, 16
        %v1030 = vrot.slane %v1028, 7
        %v1031 = vsel %vm989, %v1026, %v1030
        %v1033 = vshrl.u32 %v949, 16
        %v1035 = vrot.slane %v1033, 6
        %v1036 = vshll.u32 %v949, 16
        %v1038 = vrot.slane %v1036, 7
        %v1039 = vor.u32 %v1035, %v1038
        %v1040 = vrot.slane %v1039, 2
        %v1042 = vshll.u32 %v950, 16
        %v1044 = vrot.slane %v1042, 7
        %v1045 = vsel %vm989, %v1040, %v1044
        %v1047 = vshrl.u32 %v957, 16
        %v1049 = vrot.slane %v1047, 6
        %v1050 = vshll.u32 %v957, 16
        %v1052 = vrot.slane %v1050, 7
        %v1053 = vor.u32 %v1049, %v1052
        %v1054 = vrot.slane %v1053, 2
        %v1056 = vshll.u32 %v958, 16
        %v1058 = vrot.slane %v1056, 7
        %v1059 = vsel %vm989, %v1054, %v1058
        %v1061 = vshrl.u32 %v965, 16
        %v1063 = vrot.slane %v1061, 6
        %v1064 = vshll.u32 %v965, 16
        %v1066 = vrot.slane %v1064, 7
        %v1067 = vor.u32 %v1063, %v1066
        %v1068 = vrot.slane %v1067, 2
        %v1070 = vshll.u32 %v966, 16
        %v1072 = vrot.slane %v1070, 7
        %v1073 = vsel %vm989, %v1068, %v1072
        %v1075 = vshrl.u32 %v973, 16
        %v1077 = vrot.slane %v1075, 6
        %v1078 = vshll.u32 %v973, 16
        %v1080 = vrot.slane %v1078, 7
        %v1081 = vor.u32 %v1077, %v1080
        %v1082 = vrot.slane %v1081, 2
        %v1084 = vshll.u32 %v974, 16
        %v1086 = vrot.slane %v1084, 7
        %v1087 = vsel %vm989, %v1082, %v1086
        %v1089 = vshrl.u32 %v981, 16
        %v1091 = vrot.slane %v1089, 6
        %v1092 = vshll.u32 %v981, 16
        %v1094 = vrot.slane %v1092, 7
        %v1095 = vor.u32 %v1091, %v1094
        %v1096 = vrot.slane %v1095, 2
        %v1098 = vshll.u32 %v982, 16
        %v1100 = vrot.slane %v1098, 7
        %v1101 = vsel %vm989, %v1096, %v1100
        %v1102 = vld [vmem:[%s3] sm:$0x3]
        %v1103 = vcombine.low %v1003, %v1017
        %v1104 = vcombine.low %v1031, %v1045
        %v1106 = vunpack.c.l.s4 1983009808
        %v1107 = vunpack.c.0.s8 %v1106
        %v1108 = vlaneseq
        %v1109 = vshrl.u32 %v1108, 7
        %v1110 = vsub.s32 %v1107, %v1109
        %v1111 = vrot.slane %v1103, %v1110
        %v1113 = vunpack.c.l.s4 1983009808
        %v1114 = vunpack.c.0.s8 %v1113
        %v1115 = vlaneseq
        %v1116 = vshrl.u32 %v1115, 7
        %v1117 = vsub.s32 %v1114, %v1116
        %v1118 = vrot.slane %v1104, %v1117
        %v1119 = vcombine.low %v1111, %v1118
        %v1120 = vcombine.low %v1059, %v1073
        %v1121 = vcombine.low %v1087, %v1101
        %v1123 = vunpack.c.l.s4 1983009808
        %v1124 = vunpack.c.0.s8 %v1123
        %v1125 = vlaneseq
        %v1126 = vshrl.u32 %v1125, 7
        %v1127 = vsub.s32 %v1124, %v1126
        %v1128 = vrot.slane %v1120, %v1127
        %v1130 = vunpack.c.l.s4 1983009808
        %v1131 = vunpack.c.0.s8 %v1130
        %v1132 = vlaneseq
        %v1133 = vshrl.u32 %v1132, 7
        %v1134 = vsub.s32 %v1131, %v1133
        %v1135 = vrot.slane %v1121, %v1134
        %v1136 = vcombine.low %v1128, %v1135
        %vm1137 = vcmask 31744
        %v1139 = vsel %vm1137, %v1119, 0
        %v1142 = vsel %vm1137, %v1136, 0
        %vm1144 = vcmask 1041408
        %v1146 = vsel %vm1144, %v1102, 0
        %1148 = vmatprep.subr.bf16.mxu0 0
        %1149 = vmatpush1.bf16.msra.mxu0 %v1146
        %1150 = vmatprep.subr.bf16.mxu0 0
        %1151 = vmatpush1.bf16.msra.mxu0 0
        %1152 = vmatprep.subr.bf16.mxu0 0
        %1153 = vmatpush1.bf16.msra.mxu0 0
        %1154 = vmatprep.subr.bf16.mxu0 0
        %1155 = vmatpush1.bf16.msra.mxu0 0
        %1156 = vmatprep.subr.bf16.mxu0 0
        %1157 = vmatpush1.bf16.msra.mxu0 0
        %1158 = vmatprep.subr.bf16.mxu0 0
        %1159 = vmatpush1.bf16.msra.mxu0 0
        %1160 = vmatprep.subr.bf16.mxu0 0
        %1161 = vmatpush1.bf16.msra.mxu0 0
        %1162 = vmatprep.subr.bf16.mxu0 0
        %1163 = vmatpush1.bf16.msra.mxu0 0
        %1164 = vmatprep.subr.bf16.mxu0 0
        %1165 = vmatpush1.bf16.msra.mxu0 0
        %1166 = vmatprep.subr.bf16.mxu0 0
        %1167 = vmatpush1.bf16.msra.mxu0 0
        %1168 = vmatprep.subr.bf16.mxu0 0
        %1169 = vmatpush1.bf16.msra.mxu0 0
        %1170 = vmatprep.subr.bf16.mxu0 0
        %1171 = vmatpush1.bf16.msra.mxu0 0
        %1172 = vmatprep.subr.bf16.mxu0 0
        %1173 = vmatpush1.bf16.msra.mxu0 0
        %1174 = vmatprep.subr.bf16.mxu0 0
        %1175 = vmatpush1.bf16.msra.mxu0 0
        %1176 = vmatprep.subr.bf16.mxu0 0
        %1177 = vmatpush1.bf16.msra.mxu0 0
        %1178 = vmatprep.subr.bf16.mxu0 0
        %1179 = vmatpush1.bf16.msra.mxu0 0
        %1180 = vmatprep.mubr.bf16.mxu0 0
        %1181 = vmatmul.mubr.bf16.gmra.mrb[0].mxu0 %v1139
        %v1182 = vpop.f32.mrb[0].mxu0
        %v1183 = vadd.f32 0.0, %v1182
        %v1184 = vpop.f32.mrb[0].mxu0
        %v1185 = vpop.f32.mrb[0].mxu0
        %v1186 = vadd.f32 0.0, %v1185
        %v1187 = vpop.f32.mrb[0].mxu0
        %1188 = vmatprep.mubr.bf16.mxu0 0
        %1189 = vmatmul.mubr.bf16.gmra.mrb[0].mxu0 %v1142
        %v1190 = vpop.f32.mrb[0].mxu0
        %v1191 = vadd.f32 0.0, %v1190
        %v1192 = vpop.f32.mrb[0].mxu0
        %v1193 = vpop.f32.mrb[0].mxu0
        %v1194 = vadd.f32 0.0, %v1193
        %v1195 = vpop.f32.mrb[0].mxu0
        %1196 = vdwg.mxu0
        %v1205 = vcombine.low %v894, %v895
        %v1206 = vcombine.low %v896, %v897
        %v1208 = vunpack.c.l.s4 1983009808
        %v1209 = vunpack.c.0.s8 %v1208
        %v1210 = vlaneseq
        %v1211 = vshrl.u32 %v1210, 7
        %v1212 = vsub.s32 %v1209, %v1211
        %v1213 = vrot.slane %v1205, %v1212
        %v1215 = vunpack.c.l.s4 1983009808
        %v1216 = vunpack.c.0.s8 %v1215
        %v1217 = vlaneseq
        %v1218 = vshrl.u32 %v1217, 7
        %v1219 = vsub.s32 %v1216, %v1218
        %v1220 = vrot.slane %v1206, %v1219
        %v1221 = vcombine.low %v1213, %v1220
        %v1222 = vcombine.low %v898, %v899
        %v1223 = vcombine.low %v900, %v901
        %v1225 = vunpack.c.l.s4 1983009808
        %v1226 = vunpack.c.0.s8 %v1225
        %v1227 = vlaneseq
        %v1228 = vshrl.u32 %v1227, 7
        %v1229 = vsub.s32 %v1226, %v1228
        %v1230 = vrot.slane %v1222, %v1229
        %v1232 = vunpack.c.l.s4 1983009808
        %v1233 = vunpack.c.0.s8 %v1232
        %v1234 = vlaneseq
        %v1235 = vshrl.u32 %v1234, 7
        %v1236 = vsub.s32 %v1233, %v1235
        %v1237 = vrot.slane %v1223, %v1236
        %v1238 = vcombine.low %v1230, %v1237
        %1239 = vrot.lane.b32.xlu0 %v1221, 120
        %v1240 = vpop.permute.xlu0 %1239
        %1241 = vrot.lane.b32.xlu0 %v1238, 120
        %v1242 = vpop.permute.xlu0 %1241
        %vm1243 = vcmask 64512
        %v1245 = vsel %vm1243, %v1240, 0
        %v1248 = vsel %vm1243, %v1242, 0
        %vm1250 = vcmask 1043456
        %v1252 = vsel %vm1250, %v902, 0
        %1254 = vmatprep.subr.bf16.mxu0 0
        %1255 = vmatpush1.bf16.msra.mxu0 %v1252
        %1256 = vmatprep.subr.bf16.mxu0 0
        %1257 = vmatpush1.bf16.msra.mxu0 0
        %1258 = vmatprep.subr.bf16.mxu0 0
        %1259 = vmatpush1.bf16.msra.mxu0 0
        %1260 = vmatprep.subr.bf16.mxu0 0
        %1261 = vmatpush1.bf16.msra.mxu0 0
        %1262 = vmatprep.subr.bf16.mxu0 0
        %1263 = vmatpush1.bf16.msra.mxu0 0
        %1264 = vmatprep.subr.bf16.mxu0 0
        %1265 = vmatpush1.bf16.msra.mxu0 0
        %1266 = vmatprep.subr.bf16.mxu0 0
        %1267 = vmatpush1.bf16.msra.mxu0 0
        %1268 = vmatprep.subr.bf16.mxu0 0
        %1269 = vmatpush1.bf16.msra.mxu0 0
        %1270 = vmatprep.subr.bf16.mxu0 0
        %1271 = vmatpush1.bf16.msra.mxu0 0
        %1272 = vmatprep.subr.bf16.mxu0 0
        %1273 = vmatpush1.bf16.msra.mxu0 0
        %1274 = vmatprep.subr.bf16.mxu0 0
        %1275 = vmatpush1.bf16.msra.mxu0 0
        %1276 = vmatprep.subr.bf16.mxu0 0
        %1277 = vmatpush1.bf16.msra.mxu0 0
        %1278 = vmatprep.subr.bf16.mxu0 0
        %1279 = vmatpush1.bf16.msra.mxu0 0
        %1280 = vmatprep.subr.bf16.mxu0 0
        %1281 = vmatpush1.bf16.msra.mxu0 0
        %1282 = vmatprep.subr.bf16.mxu0 0
        %1283 = vmatpush1.bf16.msra.mxu0 0
        %1284 = vmatprep.subr.bf16.mxu0 0
        %1285 = vmatpush1.bf16.msra.mxu0 0
        %1286 = vmatprep.mubr.bf16.mxu0 0
        %1287 = vmatmul.mubr.bf16.gmra.mrb[0].mxu0 %v1245
        %v1288 = vpop.f32.mrb[0].mxu0
        %v1289 = vadd.f32 %v1183, %v1288
        %v1290 = vpop.f32.mrb[0].mxu0
        %v1291 = vpop.f32.mrb[0].mxu0
        %v1292 = vadd.f32 %v1186, %v1291
        %v1293 = vpop.f32.mrb[0].mxu0
        %1294 = vmatprep.mubr.bf16.mxu0 0
        %1295 = vmatmul.mubr.bf16.gmra.mrb[0].mxu0 %v1248
        %v1296 = vpop.f32.mrb[0].mxu0
        %v1297 = vadd.f32 %v1191, %v1296
        %v1298 = vpop.f32.mrb[0].mxu0
        %v1299 = vpop.f32.mrb[0].mxu0
        %v1300 = vadd.f32 %v1194, %v1299
        %v1301 = vpop.f32.mrb[0].mxu0
        %1302 = vdwg.mxu0
        %v1303 = vld [vmem:[%s348] sm:$0x3]
        %v1304 = vld [vmem:[%s348 + $0x8] sm:$0x3]
        %v1305 = vld [vmem:[%s348 + $0x10] sm:$0x3]
        %v1306 = vld [vmem:[%s348 + $0x18] sm:$0x3]
        %v1307 = vld [vmem:[%s348 + $0x20] sm:$0x3]
        %v1308 = vld [vmem:[%s348 + $0x28] sm:$0x3]
        %v1309 = vld [vmem:[%s348 + $0x30] sm:$0x3]
        %v1310 = vld [vmem:[%s348 + $0x38] sm:$0x3]
        %s1311 = scalar_lea.vmem %s2, 4
        %v1312 = vld [vmem:[%s1311] sm:$0xf]
        %v1321 = vcombine.low %v1303, %v1304
        %v1322 = vcombine.low %v1305, %v1306
        %v1324 = vunpack.c.l.s4 1983009808
        %v1325 = vunpack.c.0.s8 %v1324
        %v1326 = vlaneseq
        %v1327 = vshrl.u32 %v1326, 7
        %v1328 = vsub.s32 %v1325, %v1327
        %v1329 = vrot.slane %v1321, %v1328
        %v1331 = vunpack.c.l.s4 1983009808
        %v1332 = vunpack.c.0.s8 %v1331
        %v1333 = vlaneseq
        %v1334 = vshrl.u32 %v1333, 7
        %v1335 = vsub.s32 %v1332, %v1334
        %v1336 = vrot.slane %v1322, %v1335
        %v1337 = vcombine.low %v1329, %v1336
        %v1338 = vcombine.low %v1307, %v1308
        %v1339 = vcombine.low %v1309, %v1310
        %v1341 = vunpack.c.l.s4 1983009808
        %v1342 = vunpack.c.0.s8 %v1341
        %v1343 = vlaneseq
        %v1344 = vshrl.u32 %v1343, 7
        %v1345 = vsub.s32 %v1342, %v1344
        %v1346 = vrot.slane %v1338, %v1345
        %v1348 = vunpack.c.l.s4 1983009808
        %v1349 = vunpack.c.0.s8 %v1348
        %v1350 = vlaneseq
        %v1351 = vshrl.u32 %v1350, 7
        %v1352 = vsub.s32 %v1349, %v1351
        %v1353 = vrot.slane %v1339, %v1352
        %v1354 = vcombine.low %v1346, %v1353
        %1355 = vrot.lane.b32.xlu0 %v1337, 120
        %v1356 = vpop.permute.xlu0 %1355
        %1357 = vrot.lane.b32.xlu0 %v1354, 120
        %v1358 = vpop.permute.xlu0 %1357
        %v1360 = vsel %vm1243, %v1356, 0
        %v1363 = vsel %vm1243, %v1358, 0
        %v1366 = vsel %vm1250, %v1312, 0
        %1368 = vmatprep.subr.bf16.mxu0 0
        %1369 = vmatpush1.bf16.msra.mxu0 %v1366
        %1370 = vmatprep.subr.bf16.mxu0 0
        %1371 = vmatpush1.bf16.msra.mxu0 0
        %1372 = vmatprep.subr.bf16.mxu0 0
        %1373 = vmatpush1.bf16.msra.mxu0 0
        %1374 = vmatprep.subr.bf16.mxu0 0
        %1375 = vmatpush1.bf16.msra.mxu0 0
        %1376 = vmatprep.subr.bf16.mxu0 0
        %1377 = vmatpush1.bf16.msra.mxu0 0
        %1378 = vmatprep.subr.bf16.mxu0 0
        %1379 = vmatpush1.bf16.msra.mxu0 0
        %1380 = vmatprep.subr.bf16.mxu0 0
        %1381 = vmatpush1.bf16.msra.mxu0 0
        %1382 = vmatprep.subr.bf16.mxu0 0
        %1383 = vmatpush1.bf16.msra.mxu0 0
        %1384 = vmatprep.subr.bf16.mxu0 0
        %1385 = vmatpush1.bf16.msra.mxu0 0
        %1386 = vmatprep.subr.bf16.mxu0 0
        %1387 = vmatpush1.bf16.msra.mxu0 0
        %1388 = vmatprep.subr.bf16.mxu0 0
        %1389 = vmatpush1.bf16.msra.mxu0 0
        %1390 = vmatprep.subr.bf16.mxu0 0
        %1391 = vmatpush1.bf16.msra.mxu0 0
        %1392 = vmatprep.subr.bf16.mxu0 0
        %1393 = vmatpush1.bf16.msra.mxu0 0
        %1394 = vmatprep.subr.bf16.mxu0 0
        %1395 = vmatpush1.bf16.msra.mxu0 0
        %1396 = vmatprep.subr.bf16.mxu0 0
        %1397 = vmatpush1.bf16.msra.mxu0 0
        %1398 = vmatprep.subr.bf16.mxu0 0
        %1399 = vmatpush1.bf16.msra.mxu0 0
        %1400 = vmatprep.mubr.bf16.mxu0 0
        %1401 = vmatmul.mubr.bf16.gmra.mrb[0].mxu0 %v1360
        %v1402 = vpop.f32.mrb[0].mxu0
        %v1403 = vadd.f32 0.0, %v1402
        %v1404 = vpop.f32.mrb[0].mxu0
        %v1405 = vpop.f32.mrb[0].mxu0
        %v1406 = vadd.f32 0.0, %v1405
        %v1407 = vpop.f32.mrb[0].mxu0
        %1408 = vmatprep.mubr.bf16.mxu0 0
        %1409 = vmatmul.mubr.bf16.gmra.mrb[0].mxu0 %v1363
        %v1410 = vpop.f32.mrb[0].mxu0
        %v1411 = vadd.f32 0.0, %v1410
        %v1412 = vpop.f32.mrb[0].mxu0
        %v1413 = vpop.f32.mrb[0].mxu0
        %v1414 = vadd.f32 0.0, %v1413
        %v1415 = vpop.f32.mrb[0].mxu0
        %1416 = vdwg.mxu0
        %v1417 = vadd.f32 %v1289, %v1403
        %v1418 = vadd.f32 %v1292, %v1406
        %v1419 = vadd.f32 %v1297, %v1411
        %v1420 = vadd.f32 %v1300, %v1414
        %v1421 = vld [vmem:[%s348] sm:$0x7]
        %v1422 = vld [vmem:[%s348 + $0x8] sm:$0x7]
        %v1423 = vld [vmem:[%s348 + $0x10] sm:$0x7]
        %v1424 = vld [vmem:[%s348 + $0x18] sm:$0x7]
        %v1425 = vld [vmem:[%s348 + $0x20] sm:$0x7]
        %v1426 = vld [vmem:[%s348 + $0x28] sm:$0x7]
        %v1427 = vld [vmem:[%s348 + $0x30] sm:$0x7]
        %v1428 = vld [vmem:[%s348 + $0x38] sm:$0x7]
        %v1438 = vunpack.c.l.s4 1983009808
        %v1439 = vunpack.c.0.s8 %v1438
        %v1440 = vlaneseq
        %v1441 = vshrl.u32 %v1440, 7
        %v1442 = vsub.s32 %v1439, %v1441
        %v1443 = vrot.slane %v1421, %v1442
        %v1444 = vcombine.high %v1443, %v1443
        %v1446 = vunpack.c.l.s4 1983009808
        %v1447 = vunpack.c.0.s8 %v1446
        %v1448 = vlaneseq
        %v1449 = vshrl.u32 %v1448, 7
        %v1450 = vsub.s32 %v1447, %v1449
        %v1451 = vrot.slane %v1422, %v1450
        %v1452 = vcombine.high %v1451, %v1451
        %v1454 = vunpack.c.l.s4 1983009808
        %v1455 = vunpack.c.0.s8 %v1454
        %v1456 = vlaneseq
        %v1457 = vshrl.u32 %v1456, 7
        %v1458 = vsub.s32 %v1455, %v1457
        %v1459 = vrot.slane %v1423, %v1458
        %v1460 = vcombine.high %v1459, %v1459
        %v1462 = vunpack.c.l.s4 1983009808
        %v1463 = vunpack.c.0.s8 %v1462
        %v1464 = vlaneseq
        %v1465 = vshrl.u32 %v1464, 7
        %v1466 = vsub.s32 %v1463, %v1465
        %v1467 = vrot.slane %v1424, %v1466
        %v1468 = vcombine.high %v1467, %v1467
        %v1470 = vunpack.c.l.s4 1983009808
        %v1471 = vunpack.c.0.s8 %v1470
        %v1472 = vlaneseq
        %v1473 = vshrl.u32 %v1472, 7
        %v1474 = vsub.s32 %v1471, %v1473
        %v1475 = vrot.slane %v1425, %v1474
        %v1476 = vcombine.high %v1475, %v1475
        %v1478 = vunpack.c.l.s4 1983009808
        %v1479 = vunpack.c.0.s8 %v1478
        %v1480 = vlaneseq
        %v1481 = vshrl.u32 %v1480, 7
        %v1482 = vsub.s32 %v1479, %v1481
        %v1483 = vrot.slane %v1426, %v1482
        %v1484 = vcombine.high %v1483, %v1483
        %v1486 = vunpack.c.l.s4 1983009808
        %v1487 = vunpack.c.0.s8 %v1486
        %v1488 = vlaneseq
        %v1489 = vshrl.u32 %v1488, 7
        %v1490 = vsub.s32 %v1487, %v1489
        %v1491 = vrot.slane %v1427, %v1490
        %v1492 = vcombine.high %v1491, %v1491
        %v1494 = vunpack.c.l.s4 1983009808
        %v1495 = vunpack.c.0.s8 %v1494
        %v1496 = vlaneseq
        %v1497 = vshrl.u32 %v1496, 7
        %v1498 = vsub.s32 %v1495, %v1497
        %v1499 = vrot.slane %v1428, %v1498
        %v1500 = vcombine.high %v1499, %v1499
        %v1502 = vshrl.u32 %v1443, 16
        %v1504 = vrot.slane %v1502, 6
        %v1505 = vshll.u32 %v1443, 16
        %v1507 = vrot.slane %v1505, 7
        %v1508 = vor.u32 %v1504, %v1507
        %v1509 = vrot.slane %v1508, 2
        %v1511 = vshll.u32 %v1444, 16
        %v1513 = vrot.slane %v1511, 7
        %v1514 = vsel %vm989, %v1509, %v1513
        %v1516 = vshrl.u32 %v1451, 16
        %v1518 = vrot.slane %v1516, 6
        %v1519 = vshll.u32 %v1451, 16
        %v1521 = vrot.slane %v1519, 7
        %v1522 = vor.u32 %v1518, %v1521
        %v1523 = vrot.slane %v1522, 2
        %v1525 = vshll.u32 %v1452, 16
        %v1527 = vrot.slane %v1525, 7
        %v1528 = vsel %vm989, %v1523, %v1527
        %v1530 = vshrl.u32 %v1459, 16
        %v1532 = vrot.slane %v1530, 6
        %v1533 = vshll.u32 %v1459, 16
        %v1535 = vrot.slane %v1533, 7
        %v1536 = vor.u32 %v1532, %v1535
        %v1537 = vrot.slane %v1536, 2
        %v1539 = vshll.u32 %v1460, 16
        %v1541 = vrot.slane %v1539, 7
        %v1542 = vsel %vm989, %v1537, %v1541
        %v1544 = vshrl.u32 %v1467, 16
        %v1546 = vrot.slane %v1544, 6
        %v1547 = vshll.u32 %v1467, 16
        %v1549 = vrot.slane %v1547, 7
        %v1550 = vor.u32 %v1546, %v1549
        %v1551 = vrot.slane %v1550, 2
        %v1553 = vshll.u32 %v1468, 16
        %v1555 = vrot.slane %v1553, 7
        %v1556 = vsel %vm989, %v1551, %v1555
        %v1558 = vshrl.u32 %v1475, 16
        %v1560 = vrot.slane %v1558, 6
        %v1561 = vshll.u32 %v1475, 16
        %v1563 = vrot.slane %v1561, 7
        %v1564 = vor.u32 %v1560, %v1563
        %v1565 = vrot.slane %v1564, 2
        %v1567 = vshll.u32 %v1476, 16
        %v1569 = vrot.slane %v1567, 7
        %v1570 = vsel %vm989, %v1565, %v1569
        %v1572 = vshrl.u32 %v1483, 16
        %v1574 = vrot.slane %v1572, 6
        %v1575 = vshll.u32 %v1483, 16
        %v1577 = vrot.slane %v1575, 7
        %v1578 = vor.u32 %v1574, %v1577
        %v1579 = vrot.slane %v1578, 2
        %v1581 = vshll.u32 %v1484, 16
        %v1583 = vrot.slane %v1581, 7
        %v1584 = vsel %vm989, %v1579, %v1583
        %v1586 = vshrl.u32 %v1491, 16
        %v1588 = vrot.slane %v1586, 6
        %v1589 = vshll.u32 %v1491, 16
        %v1591 = vrot.slane %v1589, 7
        %v1592 = vor.u32 %v1588, %v1591
        %v1593 = vrot.slane %v1592, 2
        %v1595 = vshll.u32 %v1492, 16
        %v1597 = vrot.slane %v1595, 7
        %v1598 = vsel %vm989, %v1593, %v1597
        %v1600 = vshrl.u32 %v1499, 16
        %v1602 = vrot.slane %v1600, 6
        %v1603 = vshll.u32 %v1499, 16
        %v1605 = vrot.slane %v1603, 7
        %v1606 = vor.u32 %v1602, %v1605
        %v1607 = vrot.slane %v1606, 2
        %v1609 = vshll.u32 %v1500, 16
        %v1611 = vrot.slane %v1609, 7
        %v1612 = vsel %vm989, %v1607, %v1611
        %s1613 = scalar_lea.vmem %s3, 2
        %v1614 = vld [vmem:[%s1613] sm:$0x3]
        %v1615 = vcombine.low %v1514, %v1528
        %v1616 = vcombine.low %v1542, %v1556
        %v1618 = vunpack.c.l.s4 1983009808
        %v1619 = vunpack.c.0.s8 %v1618
        %v1620 = vlaneseq
        %v1621 = vshrl.u32 %v1620, 7
        %v1622 = vsub.s32 %v1619, %v1621
        %v1623 = vrot.slane %v1615, %v1622
        %v1625 = vunpack.c.l.s4 1983009808
        %v1626 = vunpack.c.0.s8 %v1625
        %v1627 = vlaneseq
        %v1628 = vshrl.u32 %v1627, 7
        %v1629 = vsub.s32 %v1626, %v1628
        %v1630 = vrot.slane %v1616, %v1629
        %v1631 = vcombine.low %v1623, %v1630
        %v1632 = vcombine.low %v1570, %v1584
        %v1633 = vcombine.low %v1598, %v1612
        %v1635 = vunpack.c.l.s4 1983009808
        %v1636 = vunpack.c.0.s8 %v1635
        %v1637 = vlaneseq
        %v1638 = vshrl.u32 %v1637, 7
        %v1639 = vsub.s32 %v1636, %v1638
        %v1640 = vrot.slane %v1632, %v1639
        %v1642 = vunpack.c.l.s4 1983009808
        %v1643 = vunpack.c.0.s8 %v1642
        %v1644 = vlaneseq
        %v1645 = vshrl.u32 %v1644, 7
        %v1646 = vsub.s32 %v1643, %v1645
        %v1647 = vrot.slane %v1633, %v1646
        %v1648 = vcombine.low %v1640, %v1647
        %v1650 = vsel %vm1137, %v1631, 0
        %v1653 = vsel %vm1137, %v1648, 0
        %v1656 = vsel %vm1144, %v1614, 0
        %1658 = vmatprep.subr.bf16.mxu0 0
        %1659 = vmatpush1.bf16.msra.mxu0 %v1656
        %1660 = vmatprep.subr.bf16.mxu0 0
        %1661 = vmatpush1.bf16.msra.mxu0 0
        %1662 = vmatprep.subr.bf16.mxu0 0
        %1663 = vmatpush1.bf16.msra.mxu0 0
        %1664 = vmatprep.subr.bf16.mxu0 0
        %1665 = vmatpush1.bf16.msra.mxu0 0
        %1666 = vmatprep.subr.bf16.mxu0 0
        %1667 = vmatpush1.bf16.msra.mxu0 0
        %1668 = vmatprep.subr.bf16.mxu0 0
        %1669 = vmatpush1.bf16.msra.mxu0 0
        %1670 = vmatprep.subr.bf16.mxu0 0
        %1671 = vmatpush1.bf16.msra.mxu0 0
        %1672 = vmatprep.subr.bf16.mxu0 0
        %1673 = vmatpush1.bf16.msra.mxu0 0
        %1674 = vmatprep.subr.bf16.mxu0 0
        %1675 = vmatpush1.bf16.msra.mxu0 0
        %1676 = vmatprep.subr.bf16.mxu0 0
        %1677 = vmatpush1.bf16.msra.mxu0 0
        %1678 = vmatprep.subr.bf16.mxu0 0
        %1679 = vmatpush1.bf16.msra.mxu0 0
        %1680 = vmatprep.subr.bf16.mxu0 0
        %1681 = vmatpush1.bf16.msra.mxu0 0
        %1682 = vmatprep.subr.bf16.mxu0 0
        %1683 = vmatpush1.bf16.msra.mxu0 0
        %1684 = vmatprep.subr.bf16.mxu0 0
        %1685 = vmatpush1.bf16.msra.mxu0 0
        %1686 = vmatprep.subr.bf16.mxu0 0
        %1687 = vmatpush1.bf16.msra.mxu0 0
        %1688 = vmatprep.subr.bf16.mxu0 0
        %1689 = vmatpush1.bf16.msra.mxu0 0
        %1690 = vmatprep.mubr.bf16.mxu0 0
        %1691 = vmatmul.mubr.bf16.gmra.mrb[0].mxu0 %v1650
        %v1692 = vpop.f32.mrb[0].mxu0
        %v1693 = vadd.f32 0.0, %v1692
        %v1694 = vpop.f32.mrb[0].mxu0
        %v1695 = vpop.f32.mrb[0].mxu0
        %v1696 = vadd.f32 0.0, %v1695
        %v1697 = vpop.f32.mrb[0].mxu0
        %1698 = vmatprep.mubr.bf16.mxu0 0
        %1699 = vmatmul.mubr.bf16.gmra.mrb[0].mxu0 %v1653
        %v1700 = vpop.f32.mrb[0].mxu0
        %v1701 = vadd.f32 0.0, %v1700
        %v1702 = vpop.f32.mrb[0].mxu0
        %v1703 = vpop.f32.mrb[0].mxu0
        %v1704 = vadd.f32 0.0, %v1703
        %v1705 = vpop.f32.mrb[0].mxu0
        %1706 = vdwg.mxu0
        %v1707 = vadd.f32 %v1417, %v1693
        %v1708 = vadd.f32 %v1418, %v1696
        %v1709 = vadd.f32 %v1419, %v1701
        %v1710 = vadd.f32 %v1420, %v1704
        %v1711 = vld [vmem:[%s572] sm:$0x3]
        %v1712 = vld [vmem:[%s572 + $0x8] sm:$0x3]
        %v1713 = vld [vmem:[%s572 + $0x10] sm:$0x3]
        %v1714 = vld [vmem:[%s572 + $0x18] sm:$0x3]
        %v1715 = vld [vmem:[%s572 + $0x20] sm:$0x3]
        %v1716 = vld [vmem:[%s572 + $0x28] sm:$0x3]
        %v1717 = vld [vmem:[%s572 + $0x30] sm:$0x3]
        %v1718 = vld [vmem:[%s572 + $0x38] sm:$0x3]
        %s1719 = scalar_lea.vmem %s2, 8
        %v1720 = vld [vmem:[%s1719] sm:$0xf]
        %v1729 = vcombine.low %v1711, %v1712
        %v1730 = vcombine.low %v1713, %v1714
        %v1732 = vunpack.c.l.s4 1983009808
        %v1733 = vunpack.c.0.s8 %v1732
        %v1734 = vlaneseq
        %v1735 = vshrl.u32 %v1734, 7
        %v1736 = vsub.s32 %v1733, %v1735
        %v1737 = vrot.slane %v1729, %v1736
        %v1739 = vunpack.c.l.s4 1983009808
        %v1740 = vunpack.c.0.s8 %v1739
        %v1741 = vlaneseq
        %v1742 = vshrl.u32 %v1741, 7
        %v1743 = vsub.s32 %v1740, %v1742
        %v1744 = vrot.slane %v1730, %v1743
        %v1745 = vcombine.low %v1737, %v1744
        %v1746 = vcombine.low %v1715, %v1716
        %v1747 = vcombine.low %v1717, %v1718
        %v1749 = vunpack.c.l.s4 1983009808
        %v1750 = vunpack.c.0.s8 %v1749
        %v1751 = vlaneseq
        %v1752 = vshrl.u32 %v1751, 7
        %v1753 = vsub.s32 %v1750, %v1752
        %v1754 = vrot.slane %v1746, %v1753
        %v1756 = vunpack.c.l.s4 1983009808
        %v1757 = vunpack.c.0.s8 %v1756
        %v1758 = vlaneseq
        %v1759 = vshrl.u32 %v1758, 7
        %v1760 = vsub.s32 %v1757, %v1759
        %v1761 = vrot.slane %v1747, %v1760
        %v1762 = vcombine.low %v1754, %v1761
        %1763 = vrot.lane.b32.xlu0 %v1745, 120
        %v1764 = vpop.permute.xlu0 %1763
        %1765 = vrot.lane.b32.xlu0 %v1762, 120
        %v1766 = vpop.permute.xlu0 %1765
        %v1768 = vsel %vm1243, %v1764, 0
        %v1771 = vsel %vm1243, %v1766, 0
        %v1774 = vsel %vm1250, %v1720, 0
        %1776 = vmatprep.subr.bf16.mxu0 0
        %1777 = vmatpush1.bf16.msra.mxu0 %v1774
        %1778 = vmatprep.subr.bf16.mxu0 0
        %1779 = vmatpush1.bf16.msra.mxu0 0
        %1780 = vmatprep.subr.bf16.mxu0 0
        %1781 = vmatpush1.bf16.msra.mxu0 0
        %1782 = vmatprep.subr.bf16.mxu0 0
        %1783 = vmatpush1.bf16.msra.mxu0 0
        %1784 = vmatprep.subr.bf16.mxu0 0
        %1785 = vmatpush1.bf16.msra.mxu0 0
        %1786 = vmatprep.subr.bf16.mxu0 0
        %1787 = vmatpush1.bf16.msra.mxu0 0
        %1788 = vmatprep.subr.bf16.mxu0 0
        %1789 = vmatpush1.bf16.msra.mxu0 0
        %1790 = vmatprep.subr.bf16.mxu0 0
        %1791 = vmatpush1.bf16.msra.mxu0 0
        %1792 = vmatprep.subr.bf16.mxu0 0
        %1793 = vmatpush1.bf16.msra.mxu0 0
        %1794 = vmatprep.subr.bf16.mxu0 0
        %1795 = vmatpush1.bf16.msra.mxu0 0
        %1796 = vmatprep.subr.bf16.mxu0 0
        %1797 = vmatpush1.bf16.msra.mxu0 0
        %1798 = vmatprep.subr.bf16.mxu0 0
        %1799 = vmatpush1.bf16.msra.mxu0 0
        %1800 = vmatprep.subr.bf16.mxu0 0
        %1801 = vmatpush1.bf16.msra.mxu0 0
        %1802 = vmatprep.subr.bf16.mxu0 0
        %1803 = vmatpush1.bf16.msra.mxu0 0
        %1804 = vmatprep.subr.bf16.mxu0 0
        %1805 = vmatpush1.bf16.msra.mxu0 0
        %1806 = vmatprep.subr.bf16.mxu0 0
        %1807 = vmatpush1.bf16.msra.mxu0 0
        %1808 = vmatprep.mubr.bf16.mxu0 0
        %1809 = vmatmul.mubr.bf16.gmra.mrb[0].mxu0 %v1768
        %v1810 = vpop.f32.mrb[0].mxu0
        %v1811 = vadd.f32 0.0, %v1810
        %v1812 = vpop.f32.mrb[0].mxu0
        %v1813 = vpop.f32.mrb[0].mxu0
        %v1814 = vadd.f32 0.0, %v1813
        %v1815 = vpop.f32.mrb[0].mxu0
        %1816 = vmatprep.mubr.bf16.mxu0 0
        %1817 = vmatmul.mubr.bf16.gmra.mrb[0].mxu0 %v1771
        %v1818 = vpop.f32.mrb[0].mxu0
        %v1819 = vadd.f32 0.0, %v1818
        %v1820 = vpop.f32.mrb[0].mxu0
        %v1821 = vpop.f32.mrb[0].mxu0
        %v1822 = vadd.f32 0.0, %v1821
        %v1823 = vpop.f32.mrb[0].mxu0
        %1824 = vdwg.mxu0
        %v1825 = vadd.f32 %v1707, %v1811
        %v1826 = vadd.f32 %v1708, %v1814
        %v1827 = vadd.f32 %v1709, %v1819
        %v1828 = vadd.f32 %v1710, %v1822
        %v1829 = vld [vmem:[%s572] sm:$0x7]
        %v1830 = vld [vmem:[%s572 + $0x8] sm:$0x7]
        %v1831 = vld [vmem:[%s572 + $0x10] sm:$0x7]
        %v1832 = vld [vmem:[%s572 + $0x18] sm:$0x7]
        %v1833 = vld [vmem:[%s572 + $0x20] sm:$0x7]
        %v1834 = vld [vmem:[%s572 + $0x28] sm:$0x7]
        %v1835 = vld [vmem:[%s572 + $0x30] sm:$0x7]
        %v1836 = vld [vmem:[%s572 + $0x38] sm:$0x7]
        %v1846 = vunpack.c.l.s4 1983009808
        %v1847 = vunpack.c.0.s8 %v1846
        %v1848 = vlaneseq
        %v1849 = vshrl.u32 %v1848, 7
        %v1850 = vsub.s32 %v1847, %v1849
        %v1851 = vrot.slane %v1829, %v1850
        %v1852 = vcombine.high %v1851, %v1851
        %v1854 = vunpack.c.l.s4 1983009808
        %v1855 = vunpack.c.0.s8 %v1854
        %v1856 = vlaneseq
        %v1857 = vshrl.u32 %v1856, 7
        %v1858 = vsub.s32 %v1855, %v1857
        %v1859 = vrot.slane %v1830, %v1858
        %v1860 = vcombine.high %v1859, %v1859
        %v1862 = vunpack.c.l.s4 1983009808
        %v1863 = vunpack.c.0.s8 %v1862
        %v1864 = vlaneseq
        %v1865 = vshrl.u32 %v1864, 7
        %v1866 = vsub.s32 %v1863, %v1865
        %v1867 = vrot.slane %v1831, %v1866
        %v1868 = vcombine.high %v1867, %v1867
        %v1870 = vunpack.c.l.s4 1983009808
        %v1871 = vunpack.c.0.s8 %v1870
        %v1872 = vlaneseq
        %v1873 = vshrl.u32 %v1872, 7
        %v1874 = vsub.s32 %v1871, %v1873
        %v1875 = vrot.slane %v1832, %v1874
        %v1876 = vcombine.high %v1875, %v1875
        %v1878 = vunpack.c.l.s4 1983009808
        %v1879 = vunpack.c.0.s8 %v1878
        %v1880 = vlaneseq
        %v1881 = vshrl.u32 %v1880, 7
        %v1882 = vsub.s32 %v1879, %v1881
        %v1883 = vrot.slane %v1833, %v1882
        %v1884 = vcombine.high %v1883, %v1883
        %v1886 = vunpack.c.l.s4 1983009808
        %v1887 = vunpack.c.0.s8 %v1886
        %v1888 = vlaneseq
        %v1889 = vshrl.u32 %v1888, 7
        %v1890 = vsub.s32 %v1887, %v1889
        %v1891 = vrot.slane %v1834, %v1890
        %v1892 = vcombine.high %v1891, %v1891
        %v1894 = vunpack.c.l.s4 1983009808
        %v1895 = vunpack.c.0.s8 %v1894
        %v1896 = vlaneseq
        %v1897 = vshrl.u32 %v1896, 7
        %v1898 = vsub.s32 %v1895, %v1897
        %v1899 = vrot.slane %v1835, %v1898
        %v1900 = vcombine.high %v1899, %v1899
        %v1902 = vunpack.c.l.s4 1983009808
        %v1903 = vunpack.c.0.s8 %v1902
        %v1904 = vlaneseq
        %v1905 = vshrl.u32 %v1904, 7
        %v1906 = vsub.s32 %v1903, %v1905
        %v1907 = vrot.slane %v1836, %v1906
        %v1908 = vcombine.high %v1907, %v1907
        %v1910 = vshrl.u32 %v1851, 16
        %v1912 = vrot.slane %v1910, 6
        %v1913 = vshll.u32 %v1851, 16
        %v1915 = vrot.slane %v1913, 7
        %v1916 = vor.u32 %v1912, %v1915
        %v1917 = vrot.slane %v1916, 2
        %v1919 = vshll.u32 %v1852, 16
        %v1921 = vrot.slane %v1919, 7
        %v1922 = vsel %vm989, %v1917, %v1921
        %v1924 = vshrl.u32 %v1859, 16
        %v1926 = vrot.slane %v1924, 6
        %v1927 = vshll.u32 %v1859, 16
        %v1929 = vrot.slane %v1927, 7
        %v1930 = vor.u32 %v1926, %v1929
        %v1931 = vrot.slane %v1930, 2
        %v1933 = vshll.u32 %v1860, 16
        %v1935 = vrot.slane %v1933, 7
        %v1936 = vsel %vm989, %v1931, %v1935
        %v1938 = vshrl.u32 %v1867, 16
        %v1940 = vrot.slane %v1938, 6
        %v1941 = vshll.u32 %v1867, 16
        %v1943 = vrot.slane %v1941, 7
        %v1944 = vor.u32 %v1940, %v1943
        %v1945 = vrot.slane %v1944, 2
        %v1947 = vshll.u32 %v1868, 16
        %v1949 = vrot.slane %v1947, 7
        %v1950 = vsel %vm989, %v1945, %v1949
        %v1952 = vshrl.u32 %v1875, 16
        %v1954 = vrot.slane %v1952, 6
        %v1955 = vshll.u32 %v1875, 16
        %v1957 = vrot.slane %v1955, 7
        %v1958 = vor.u32 %v1954, %v1957
        %v1959 = vrot.slane %v1958, 2
        %v1961 = vshll.u32 %v1876, 16
        %v1963 = vrot.slane %v1961, 7
        %v1964 = vsel %vm989, %v1959, %v1963
        %v1966 = vshrl.u32 %v1883, 16
        %v1968 = vrot.slane %v1966, 6
        %v1969 = vshll.u32 %v1883, 16
        %v1971 = vrot.slane %v1969, 7
        %v1972 = vor.u32 %v1968, %v1971
        %v1973 = vrot.slane %v1972, 2
        %v1975 = vshll.u32 %v1884, 16
        %v1977 = vrot.slane %v1975, 7
        %v1978 = vsel %vm989, %v1973, %v1977
        %v1980 = vshrl.u32 %v1891, 16
        %v1982 = vrot.slane %v1980, 6
        %v1983 = vshll.u32 %v1891, 16
        %v1985 = vrot.slane %v1983, 7
        %v1986 = vor.u32 %v1982, %v1985
        %v1987 = vrot.slane %v1986, 2
        %v1989 = vshll.u32 %v1892, 16
        %v1991 = vrot.slane %v1989, 7
        %v1992 = vsel %vm989, %v1987, %v1991
        %v1994 = vshrl.u32 %v1899, 16
        %v1996 = vrot.slane %v1994, 6
        %v1997 = vshll.u32 %v1899, 16
        %v1999 = vrot.slane %v1997, 7
        %v2000 = vor.u32 %v1996, %v1999
        %v2001 = vrot.slane %v2000, 2
        %v2003 = vshll.u32 %v1900, 16
        %v2005 = vrot.slane %v2003, 7
        %v2006 = vsel %vm989, %v2001, %v2005
        %v2008 = vshrl.u32 %v1907, 16
        %v2010 = vrot.slane %v2008, 6
        %v2011 = vshll.u32 %v1907, 16
        %v2013 = vrot.slane %v2011, 7
        %v2014 = vor.u32 %v2010, %v2013
        %v2015 = vrot.slane %v2014, 2
        %v2017 = vshll.u32 %v1908, 16
        %v2019 = vrot.slane %v2017, 7
        %v2020 = vsel %vm989, %v2015, %v2019
        %s2021 = scalar_lea.vmem %s3, 4
        %v2022 = vld [vmem:[%s2021] sm:$0x3]
        %v2023 = vcombine.low %v1922, %v1936
        %v2024 = vcombine.low %v1950, %v1964
        %v2026 = vunpack.c.l.s4 1983009808
        %v2027 = vunpack.c.0.s8 %v2026
        %v2028 = vlaneseq
        %v2029 = vshrl.u32 %v2028, 7
        %v2030 = vsub.s32 %v2027, %v2029
        %v2031 = vrot.slane %v2023, %v2030
        %v2033 = vunpack.c.l.s4 1983009808
        %v2034 = vunpack.c.0.s8 %v2033
        %v2035 = vlaneseq
        %v2036 = vshrl.u32 %v2035, 7
        %v2037 = vsub.s32 %v2034, %v2036
        %v2038 = vrot.slane %v2024, %v2037
        %v2039 = vcombine.low %v2031, %v2038
        %v2040 = vcombine.low %v1978, %v1992
        %v2041 = vcombine.low %v2006, %v2020
        %v2043 = vunpack.c.l.s4 1983009808
        %v2044 = vunpack.c.0.s8 %v2043
        %v2045 = vlaneseq
        %v2046 = vshrl.u32 %v2045, 7
        %v2047 = vsub.s32 %v2044, %v2046
        %v2048 = vrot.slane %v2040, %v2047
        %v2050 = vunpack.c.l.s4 1983009808
        %v2051 = vunpack.c.0.s8 %v2050
        %v2052 = vlaneseq
        %v2053 = vshrl.u32 %v2052, 7
        %v2054 = vsub.s32 %v2051, %v2053
        %v2055 = vrot.slane %v2041, %v2054
        %v2056 = vcombine.low %v2048, %v2055
        %v2058 = vsel %vm1137, %v2039, 0
        %v2061 = vsel %vm1137, %v2056, 0
        %v2064 = vsel %vm1144, %v2022, 0
        %2066 = vmatprep.subr.bf16.mxu0 0
        %2067 = vmatpush1.bf16.msra.mxu0 %v2064
        %2068 = vmatprep.subr.bf16.mxu0 0
        %2069 = vmatpush1.bf16.msra.mxu0 0
        %2070 = vmatprep.subr.bf16.mxu0 0
        %2071 = vmatpush1.bf16.msra.mxu0 0
        %2072 = vmatprep.subr.bf16.mxu0 0
        %2073 = vmatpush1.bf16.msra.mxu0 0
        %2074 = vmatprep.subr.bf16.mxu0 0
        %2075 = vmatpush1.bf16.msra.mxu0 0
        %2076 = vmatprep.subr.bf16.mxu0 0
        %2077 = vmatpush1.bf16.msra.mxu0 0
        %2078 = vmatprep.subr.bf16.mxu0 0
        %2079 = vmatpush1.bf16.msra.mxu0 0
        %2080 = vmatprep.subr.bf16.mxu0 0
        %2081 = vmatpush1.bf16.msra.mxu0 0
        %2082 = vmatprep.subr.bf16.mxu0 0
        %2083 = vmatpush1.bf16.msra.mxu0 0
        %2084 = vmatprep.subr.bf16.mxu0 0
        %2085 = vmatpush1.bf16.msra.mxu0 0
        %2086 = vmatprep.subr.bf16.mxu0 0
        %2087 = vmatpush1.bf16.msra.mxu0 0
        %2088 = vmatprep.subr.bf16.mxu0 0
        %2089 = vmatpush1.bf16.msra.mxu0 0
        %2090 = vmatprep.subr.bf16.mxu0 0
        %2091 = vmatpush1.bf16.msra.mxu0 0
        %2092 = vmatprep.subr.bf16.mxu0 0
        %2093 = vmatpush1.bf16.msra.mxu0 0
        %2094 = vmatprep.subr.bf16.mxu0 0
        %2095 = vmatpush1.bf16.msra.mxu0 0
        %2096 = vmatprep.subr.bf16.mxu0 0
        %2097 = vmatpush1.bf16.msra.mxu0 0
        %2098 = vmatprep.mubr.bf16.mxu0 0
        %2099 = vmatmul.mubr.bf16.gmra.mrb[0].mxu0 %v2058
        %v2100 = vpop.f32.mrb[0].mxu0
        %v2101 = vadd.f32 0.0, %v2100
        %v2102 = vpop.f32.mrb[0].mxu0
        %v2103 = vpop.f32.mrb[0].mxu0
        %v2104 = vadd.f32 0.0, %v2103
        %v2105 = vpop.f32.mrb[0].mxu0
        %2106 = vmatprep.mubr.bf16.mxu0 0
        %2107 = vmatmul.mubr.bf16.gmra.mrb[0].mxu0 %v2061
        %v2108 = vpop.f32.mrb[0].mxu0
        %v2109 = vadd.f32 0.0, %v2108
        %v2110 = vpop.f32.mrb[0].mxu0
        %v2111 = vpop.f32.mrb[0].mxu0
        %v2112 = vadd.f32 0.0, %v2111
        %v2113 = vpop.f32.mrb[0].mxu0
        %2114 = vdwg.mxu0
        %v2115 = vadd.f32 %v1825, %v2101
        %v2116 = vadd.f32 %v1826, %v2104
        %v2117 = vadd.f32 %v1827, %v2109
        %v2118 = vadd.f32 %v1828, %v2112
        %v2119 = vld [vmem:[%s4] sm:$0x1]
        %v2121 = vlaneseq
        %v2122 = vshrl.u32 %v2121, 7
        %v2123 = vsub.s32 0, %v2122
        %v2124 = vrot.slane %v2119, %v2123
        %v2126 = vadd.f32 %v2115, %v2124
        %v2127 = vadd.f32 %v2116, %v2124
        %v2128 = vadd.f32 %v2117, %v2124
        %v2129 = vadd.f32 %v2118, %v2124
        %v2130 = vmax.f32 %v2126, 0.0
        %v2131 = vmax.f32 %v2127, 0.0
        %v2132 = vmax.f32 %v2128, 0.0
        %v2133 = vmax.f32 %v2129, 0.0
        %v2134 = vpack.c.bf16 %v2131, %v2130
        %v2135 = vpack.c.bf16 %v2133, %v2132
        %v2138 = vcombine.high %v2134, %v2134
        %v2140 = vunpack.c.l.s4 1983009808
        %v2141 = vunpack.c.0.s8 %v2140
        %v2142 = vlaneseq
        %v2143 = vshrl.u32 %v2142, 7
        %v2144 = vsub.s32 %v2141, %v2143
        %v2145 = vrot.slane %v2134, %v2144
        %v2147 = vunpack.c.l.s4 1983009808
        %v2148 = vunpack.c.0.s8 %v2147
        %v2149 = vlaneseq
        %v2150 = vshrl.u32 %v2149, 7
        %v2151 = vsub.s32 %v2148, %v2150
        %v2152 = vrot.slane %v2138, %v2151
        %v2153 = vcombine.high %v2145, %v2145
        %v2154 = vcombine.high %v2152, %v2152
        %v2155 = vcombine.high %v2135, %v2135
        %v2157 = vunpack.c.l.s4 1983009808
        %v2158 = vunpack.c.0.s8 %v2157
        %v2159 = vlaneseq
        %v2160 = vshrl.u32 %v2159, 7
        %v2161 = vsub.s32 %v2158, %v2160
        %v2162 = vrot.slane %v2135, %v2161
        %v2164 = vunpack.c.l.s4 1983009808
        %v2165 = vunpack.c.0.s8 %v2164
        %v2166 = vlaneseq
        %v2167 = vshrl.u32 %v2166, 7
        %v2168 = vsub.s32 %v2165, %v2167
        %v2169 = vrot.slane %v2155, %v2168
        %v2170 = vcombine.high %v2162, %v2162
        %v2171 = vcombine.high %v2169, %v2169
        %v2173 = vunpack.c.l.s4 1983009808
        %v2174 = vunpack.c.0.s8 %v2173
        %v2175 = vlaneseq
        %v2176 = vshrl.u32 %v2175, 7
        %v2177 = vsub.s32 %v2174, %v2176
        %v2178 = vrot.slane %v2145, %v2177
        %v2180 = vunpack.c.l.s4 1983009808
        %v2181 = vunpack.c.0.s8 %v2180
        %v2182 = vlaneseq
        %v2183 = vshrl.u32 %v2182, 7
        %v2184 = vsub.s32 %v2181, %v2183
        %v2185 = vrot.slane %v2153, %v2184
        %v2187 = vunpack.c.l.s4 1983009808
        %v2188 = vunpack.c.0.s8 %v2187
        %v2189 = vlaneseq
        %v2190 = vshrl.u32 %v2189, 7
        %v2191 = vsub.s32 %v2188, %v2190
        %v2192 = vrot.slane %v2152, %v2191
        %v2194 = vunpack.c.l.s4 1983009808
        %v2195 = vunpack.c.0.s8 %v2194
        %v2196 = vlaneseq
        %v2197 = vshrl.u32 %v2196, 7
        %v2198 = vsub.s32 %v2195, %v2197
        %v2199 = vrot.slane %v2154, %v2198
        %v2201 = vunpack.c.l.s4 1983009808
        %v2202 = vunpack.c.0.s8 %v2201
        %v2203 = vlaneseq
        %v2204 = vshrl.u32 %v2203, 7
        %v2205 = vsub.s32 %v2202, %v2204
        %v2206 = vrot.slane %v2162, %v2205
        %v2208 = vunpack.c.l.s4 1983009808
        %v2209 = vunpack.c.0.s8 %v2208
        %v2210 = vlaneseq
        %v2211 = vshrl.u32 %v2210, 7
        %v2212 = vsub.s32 %v2209, %v2211
        %v2213 = vrot.slane %v2170, %v2212
        %v2215 = vunpack.c.l.s4 1983009808
        %v2216 = vunpack.c.0.s8 %v2215
        %v2217 = vlaneseq
        %v2218 = vshrl.u32 %v2217, 7
        %v2219 = vsub.s32 %v2216, %v2218
        %v2220 = vrot.slane %v2169, %v2219
        %v2222 = vunpack.c.l.s4 1983009808
        %v2223 = vunpack.c.0.s8 %v2222
        %v2224 = vlaneseq
        %v2225 = vshrl.u32 %v2224, 7
        %v2226 = vsub.s32 %v2223, %v2225
        %v2227 = vrot.slane %v2171, %v2226
        %v2229 = vshrl.u32 %v2178, 16
        %v2231 = vrot.slane %v2229, 7
        %v2232 = vshll.u32 %v2178, 16
        %v2234 = vor.u32 %v2231, %v2232
        %v2236 = vshrl.u32 %v2185, 16
        %v2238 = vrot.slane %v2236, 7
        %v2239 = vshll.u32 %v2185, 16
        %v2241 = vor.u32 %v2238, %v2239
        %v2243 = vshrl.u32 %v2192, 16
        %v2245 = vrot.slane %v2243, 7
        %v2246 = vshll.u32 %v2192, 16
        %v2248 = vor.u32 %v2245, %v2246
        %v2250 = vshrl.u32 %v2199, 16
        %v2252 = vrot.slane %v2250, 7
        %v2253 = vshll.u32 %v2199, 16
        %v2255 = vor.u32 %v2252, %v2253
        %v2257 = vshrl.u32 %v2206, 16
        %v2259 = vrot.slane %v2257, 7
        %v2260 = vshll.u32 %v2206, 16
        %v2262 = vor.u32 %v2259, %v2260
        %v2264 = vshrl.u32 %v2213, 16
        %v2266 = vrot.slane %v2264, 7
        %v2267 = vshll.u32 %v2213, 16
        %v2269 = vor.u32 %v2266, %v2267
        %v2271 = vshrl.u32 %v2220, 16
        %v2273 = vrot.slane %v2271, 7
        %v2274 = vshll.u32 %v2220, 16
        %v2276 = vor.u32 %v2273, %v2274
        %v2278 = vshrl.u32 %v2227, 16
        %v2280 = vrot.slane %v2278, 7
        %v2281 = vshll.u32 %v2227, 16
        %v2283 = vor.u32 %v2280, %v2281
        %2284 = vrot.lane.b32.xlu0 %v2234, 16
        %v2285 = vpop.permute.xlu0 %2284
        %2286 = vrot.lane.b32.xlu0 %v2241, 16
        %v2287 = vpop.permute.xlu0 %2286
        %2288 = vrot.lane.b32.xlu0 %v2248, 16
        %v2289 = vpop.permute.xlu0 %2288
        %2290 = vrot.lane.b32.xlu0 %v2255, 16
        %v2291 = vpop.permute.xlu0 %2290
        %2292 = vrot.lane.b32.xlu0 %v2262, 16
        %v2293 = vpop.permute.xlu0 %2292
        %2294 = vrot.lane.b32.xlu0 %v2269, 16
        %v2295 = vpop.permute.xlu0 %2294
        %2296 = vrot.lane.b32.xlu0 %v2276, 16
        %v2297 = vpop.permute.xlu0 %2296
        %2298 = vrot.lane.b32.xlu0 %v2283, 16
        %v2299 = vpop.permute.xlu0 %2298
        %vm2308 = vcmask 256128
        %vm2309 = vmand %vm2308, %vm868
        %v2310 = vld [vmem:[%s866] sm:$0x7]
        %v2311 = vsel %vm2309, %v2285, %v2310
        %2312 = vst [vmem:[%s866] sm:$0x7] %v2311
        %v2313 = vld [vmem:[%s866 + $0x4] sm:$0x7]
        %v2314 = vsel %vm2309, %v2287, %v2313
        %2315 = vst [vmem:[%s866 + $0x4] sm:$0x7] %v2314
        %v2316 = vld [vmem:[%s866 + $0x8] sm:$0x7]
        %v2317 = vsel %vm2309, %v2289, %v2316
        %2318 = vst [vmem:[%s866 + $0x8] sm:$0x7] %v2317
        %v2319 = vld [vmem:[%s866 + $0xc] sm:$0x7]
        %v2320 = vsel %vm2309, %v2291, %v2319
        %2321 = vst [vmem:[%s866 + $0xc] sm:$0x7] %v2320
        %v2322 = vld [vmem:[%s866 + $0x10] sm:$0x7]
        %v2323 = vsel %vm2309, %v2293, %v2322
        %2324 = vst [vmem:[%s866 + $0x10] sm:$0x7] %v2323
        %v2325 = vld [vmem:[%s866 + $0x14] sm:$0x7]
        %v2326 = vsel %vm2309, %v2295, %v2325
        %2327 = vst [vmem:[%s866 + $0x14] sm:$0x7] %v2326
        %v2328 = vld [vmem:[%s866 + $0x18] sm:$0x7]
        %v2329 = vsel %vm2309, %v2297, %v2328
        %2330 = vst [vmem:[%s866 + $0x18] sm:$0x7] %v2329
        %v2331 = vld [vmem:[%s866 + $0x1c] sm:$0x7]
        %v2332 = vsel %vm2309, %v2299, %v2331
        %2333 = vst [vmem:[%s866 + $0x1c] sm:$0x7] %v2332
        %s2334 = scalar_lea.vmem [#allocation2], 4
        %v2335 = vld [vmem:[%s2334] sm:$0x3]
        %v2336 = vld [vmem:[%s2334 + $0x8] sm:$0x3]
        %v2337 = vld [vmem:[%s2334 + $0x10] sm:$0x3]
        %v2338 = vld [vmem:[%s2334 + $0x18] sm:$0x3]
        %v2339 = vld [vmem:[%s5] sm:$0xf]
        %v2340 = vld [vmem:[%s5 + $0x4] sm:$0xf]
        %v2341 = vld [vmem:[%s2334] sm:$0x7]
        %v2342 = vld [vmem:[%s2334 + $0x8] sm:$0x7]
        %v2343 = vld [vmem:[%s2334 + $0x10] sm:$0x7]
        %v2344 = vld [vmem:[%s2334 + $0x18] sm:$0x7]
        %v2350 = vunpack.c.l.s4 1983009808
        %v2351 = vunpack.c.0.s8 %v2350
        %v2352 = vlaneseq
        %v2353 = vshrl.u32 %v2352, 7
        %v2354 = vsub.s32 %v2351, %v2353
        %v2355 = vrot.slane %v2341, %v2354
        %v2356 = vcombine.high %v2355, %v2355
        %v2358 = vunpack.c.l.s4 1983009808
        %v2359 = vunpack.c.0.s8 %v2358
        %v2360 = vlaneseq
        %v2361 = vshrl.u32 %v2360, 7
        %v2362 = vsub.s32 %v2359, %v2361
        %v2363 = vrot.slane %v2342, %v2362
        %v2364 = vcombine.high %v2363, %v2363
        %v2366 = vunpack.c.l.s4 1983009808
        %v2367 = vunpack.c.0.s8 %v2366
        %v2368 = vlaneseq
        %v2369 = vshrl.u32 %v2368, 7
        %v2370 = vsub.s32 %v2367, %v2369
        %v2371 = vrot.slane %v2343, %v2370
        %v2372 = vcombine.high %v2371, %v2371
        %v2374 = vunpack.c.l.s4 1983009808
        %v2375 = vunpack.c.0.s8 %v2374
        %v2376 = vlaneseq
        %v2377 = vshrl.u32 %v2376, 7
        %v2378 = vsub.s32 %v2375, %v2377
        %v2379 = vrot.slane %v2344, %v2378
        %v2380 = vcombine.high %v2379, %v2379
        %v2382 = vshrl.u32 %v2355, 16
        %v2384 = vrot.slane %v2382, 6
        %v2385 = vshll.u32 %v2355, 16
        %v2387 = vrot.slane %v2385, 7
        %v2388 = vor.u32 %v2384, %v2387
        %v2389 = vrot.slane %v2388, 2
        %v2391 = vshll.u32 %v2356, 16
        %v2393 = vrot.slane %v2391, 7
        %v2394 = vsel %vm989, %v2389, %v2393
        %v2396 = vshrl.u32 %v2363, 16
        %v2398 = vrot.slane %v2396, 6
        %v2399 = vshll.u32 %v2363, 16
        %v2401 = vrot.slane %v2399, 7
        %v2402 = vor.u32 %v2398, %v2401
        %v2403 = vrot.slane %v2402, 2
        %v2405 = vshll.u32 %v2364, 16
        %v2407 = vrot.slane %v2405, 7
        %v2408 = vsel %vm989, %v2403, %v2407
        %v2410 = vshrl.u32 %v2371, 16
        %v2412 = vrot.slane %v2410, 6
        %v2413 = vshll.u32 %v2371, 16
        %v2415 = vrot.slane %v2413, 7
        %v2416 = vor.u32 %v2412, %v2415
        %v2417 = vrot.slane %v2416, 2
        %v2419 = vshll.u32 %v2372, 16
        %v2421 = vrot.slane %v2419, 7
        %v2422 = vsel %vm989, %v2417, %v2421
        %v2424 = vshrl.u32 %v2379, 16
        %v2426 = vrot.slane %v2424, 6
        %v2427 = vshll.u32 %v2379, 16
        %v2429 = vrot.slane %v2427, 7
        %v2430 = vor.u32 %v2426, %v2429
        %v2431 = vrot.slane %v2430, 2
        %v2433 = vshll.u32 %v2380, 16
        %v2435 = vrot.slane %v2433, 7
        %v2436 = vsel %vm989, %v2431, %v2435
        %v2437 = vld [vmem:[%s6] sm:$0xf]
        %v2438 = vld [vmem:[%s6 + $0x4] sm:$0xf]
        %v2439 = vld [vmem:[%s6 + $0x8] sm:$0xf]
        %v2440 = vld [vmem:[%s6 + $0xc] sm:$0xf]
        %v2441 = vcombine.low %v2394, %v2408
        %v2442 = vcombine.low %v2422, %v2436
        %v2444 = vunpack.c.l.s4 1983009808
        %v2445 = vunpack.c.0.s8 %v2444
        %v2446 = vlaneseq
        %v2447 = vshrl.u32 %v2446, 7
        %v2448 = vsub.s32 %v2445, %v2447
        %v2449 = vrot.slane %v2441, %v2448
        %v2451 = vunpack.c.l.s4 1983009808
        %v2452 = vunpack.c.0.s8 %v2451
        %v2453 = vlaneseq
        %v2454 = vshrl.u32 %v2453, 7
        %v2455 = vsub.s32 %v2452, %v2454
        %v2456 = vrot.slane %v2442, %v2455
        %v2457 = vcombine.low %v2449, %v2456
        %v2462 = vunpack.c.l.b16 %v2437
        %v2463 = vunpack.c.l.b16 %v2438
        %v2464 = vunpack.c.l.b16 %v2439
        %v2465 = vunpack.c.l.b16 %v2440
        %v2466 = vpack.c.b16 %v2463, %v2462
        %v2467 = vpack.c.b16 %v2465, %v2464
        %vm2470 = vcmask 261120
        %v2472 = vsel %vm2470, %v2457, 0
        %2474 = vmatprep.subr.bf16.mxu0 0
        %2475 = vmatpush1.bf16.msra.mxu0 %v2466
        %2476 = vmatprep.subr.bf16.mxu0 0
        %2477 = vmatpush1.bf16.msra.mxu0 %v2467
        %2478 = vmatprep.subr.bf16.mxu0 0
        %2479 = vmatpush1.bf16.msra.mxu0 0
        %2480 = vmatprep.subr.bf16.mxu0 0
        %2481 = vmatpush1.bf16.msra.mxu0 0
        %2482 = vmatprep.subr.bf16.mxu0 0
        %2483 = vmatpush1.bf16.msra.mxu0 0
        %2484 = vmatprep.subr.bf16.mxu0 0
        %2485 = vmatpush1.bf16.msra.mxu0 0
        %2486 = vmatprep.subr.bf16.mxu0 0
        %2487 = vmatpush1.bf16.msra.mxu0 0
        %2488 = vmatprep.subr.bf16.mxu0 0
        %2489 = vmatpush1.bf16.msra.mxu0 0
        %2490 = vmatprep.subr.bf16.mxu0 0
        %2491 = vmatpush1.bf16.msra.mxu0 0
        %2492 = vmatprep.subr.bf16.mxu0 0
        %2493 = vmatpush1.bf16.msra.mxu0 0
        %2494 = vmatprep.subr.bf16.mxu0 0
        %2495 = vmatpush1.bf16.msra.mxu0 0
        %2496 = vmatprep.subr.bf16.mxu0 0
        %2497 = vmatpush1.bf16.msra.mxu0 0
        %2498 = vmatprep.subr.bf16.mxu0 0
        %2499 = vmatpush1.bf16.msra.mxu0 0
        %2500 = vmatprep.subr.bf16.mxu0 0
        %2501 = vmatpush1.bf16.msra.mxu0 0
        %2502 = vmatprep.subr.bf16.mxu0 0
        %2503 = vmatpush1.bf16.msra.mxu0 0
        %2504 = vmatprep.subr.bf16.mxu0 0
        %2505 = vmatpush1.bf16.msra.mxu0 0
        %2506 = vmatprep.mubr.bf16.mxu0 0
        %2507 = vmatmul.mubr.bf16.gmra.mrb[0].mxu0 %v2472
        %v2508 = vpop.f32.mrb[0].mxu0
        %v2509 = vadd.f32 0.0, %v2508
        %v2510 = vpop.f32.mrb[0].mxu0
        %v2511 = vpop.f32.mrb[0].mxu0
        %v2512 = vadd.f32 0.0, %v2511
        %v2513 = vpop.f32.mrb[0].mxu0
        %2514 = vdwg.mxu0
        %v2519 = vcombine.low %v2335, %v2336
        %v2520 = vcombine.low %v2337, %v2338
        %v2522 = vunpack.c.l.s4 1983009808
        %v2523 = vunpack.c.0.s8 %v2522
        %v2524 = vlaneseq
        %v2525 = vshrl.u32 %v2524, 7
        %v2526 = vsub.s32 %v2523, %v2525
        %v2527 = vrot.slane %v2519, %v2526
        %v2529 = vunpack.c.l.s4 1983009808
        %v2530 = vunpack.c.0.s8 %v2529
        %v2531 = vlaneseq
        %v2532 = vshrl.u32 %v2531, 7
        %v2533 = vsub.s32 %v2530, %v2532
        %v2534 = vrot.slane %v2520, %v2533
        %v2535 = vcombine.low %v2527, %v2534
        %2536 = vrot.lane.b32.xlu0 %v2535, 112
        %v2537 = vpop.permute.xlu0 %2536
        %v2540 = vunpack.c.l.b16 %v2339
        %v2541 = vunpack.c.l.b16 %v2340
        %v2542 = vpack.c.b16 %v2541, %v2540
        %vm2544 = vcmask 130048
        %v2546 = vsel %vm2544, %v2537, 0
        %2548 = vmatprep.subr.bf16.mxu0 0
        %2549 = vmatpush1.bf16.msra.mxu0 %v2542
        %2550 = vmatprep.subr.bf16.mxu0 0
        %2551 = vmatpush1.bf16.msra.mxu0 0
        %2552 = vmatprep.subr.bf16.mxu0 0
        %2553 = vmatpush1.bf16.msra.mxu0 0
        %2554 = vmatprep.subr.bf16.mxu0 0
        %2555 = vmatpush1.bf16.msra.mxu0 0
        %2556 = vmatprep.subr.bf16.mxu0 0
        %2557 = vmatpush1.bf16.msra.mxu0 0
        %2558 = vmatprep.subr.bf16.mxu0 0
        %2559 = vmatpush1.bf16.msra.mxu0 0
        %2560 = vmatprep.subr.bf16.mxu0 0
        %2561 = vmatpush1.bf16.msra.mxu0 0
        %2562 = vmatprep.subr.bf16.mxu0 0
        %2563 = vmatpush1.bf16.msra.mxu0 0
        %2564 = vmatprep.subr.bf16.mxu0 0
        %2565 = vmatpush1.bf16.msra.mxu0 0
        %2566 = vmatprep.subr.bf16.mxu0 0
        %2567 = vmatpush1.bf16.msra.mxu0 0
        %2568 = vmatprep.subr.bf16.mxu0 0
        %2569 = vmatpush1.bf16.msra.mxu0 0
        %2570 = vmatprep.subr.bf16.mxu0 0
        %2571 = vmatpush1.bf16.msra.mxu0 0
        %2572 = vmatprep.subr.bf16.mxu0 0
        %2573 = vmatpush1.bf16.msra.mxu0 0
        %2574 = vmatprep.subr.bf16.mxu0 0
        %2575 = vmatpush1.bf16.msra.mxu0 0
        %2576 = vmatprep.subr.bf16.mxu0 0
        %2577 = vmatpush1.bf16.msra.mxu0 0
        %2578 = vmatprep.subr.bf16.mxu0 0
        %2579 = vmatpush1.bf16.msra.mxu0 0
        %2580 = vmatprep.mubr.bf16.mxu0 0
        %2581 = vmatmul.mubr.bf16.gmra.mrb[0].mxu0 %v2546
        %v2582 = vpop.f32.mrb[0].mxu0
        %v2583 = vadd.f32 %v2509, %v2582
        %v2584 = vpop.f32.mrb[0].mxu0
        %v2585 = vpop.f32.mrb[0].mxu0
        %v2586 = vadd.f32 %v2512, %v2585
        %v2587 = vpop.f32.mrb[0].mxu0
        %2588 = vdwg.mxu0
        %v2589 = vld [vmem:[%s866] sm:$0x3]
        %v2590 = vld [vmem:[%s866 + $0x8] sm:$0x3]
        %v2591 = vld [vmem:[%s866 + $0x10] sm:$0x3]
        %v2592 = vld [vmem:[%s866 + $0x18] sm:$0x3]
        %s2593 = scalar_lea.vmem %s5, 8
        %v2594 = vld [vmem:[%s2593] sm:$0xf]
        %v2595 = vld [vmem:[%s2593 + $0x4] sm:$0xf]
        %v2600 = vcombine.low %v2589, %v2590
        %v2601 = vcombine.low %v2591, %v2592
        %v2603 = vunpack.c.l.s4 1983009808
        %v2604 = vunpack.c.0.s8 %v2603
        %v2605 = vlaneseq
        %v2606 = vshrl.u32 %v2605, 7
        %v2607 = vsub.s32 %v2604, %v2606
        %v2608 = vrot.slane %v2600, %v2607
        %v2610 = vunpack.c.l.s4 1983009808
        %v2611 = vunpack.c.0.s8 %v2610
        %v2612 = vlaneseq
        %v2613 = vshrl.u32 %v2612, 7
        %v2614 = vsub.s32 %v2611, %v2613
        %v2615 = vrot.slane %v2601, %v2614
        %v2616 = vcombine.low %v2608, %v2615
        %2617 = vrot.lane.b32.xlu0 %v2616, 112
        %v2618 = vpop.permute.xlu0 %2617
        %v2621 = vunpack.c.l.b16 %v2594
        %v2622 = vunpack.c.l.b16 %v2595
        %v2623 = vpack.c.b16 %v2622, %v2621
        %v2626 = vsel %vm2544, %v2618, 0
        %2628 = vmatprep.subr.bf16.mxu0 0
        %2629 = vmatpush1.bf16.msra.mxu0 %v2623
        %2630 = vmatprep.subr.bf16.mxu0 0
        %2631 = vmatpush1.bf16.msra.mxu0 0
        %2632 = vmatprep.subr.bf16.mxu0 0
        %2633 = vmatpush1.bf16.msra.mxu0 0
        %2634 = vmatprep.subr.bf16.mxu0 0
        %2635 = vmatpush1.bf16.msra.mxu0 0
        %2636 = vmatprep.subr.bf16.mxu0 0
        %2637 = vmatpush1.bf16.msra.mxu0 0
        %2638 = vmatprep.subr.bf16.mxu0 0
        %2639 = vmatpush1.bf16.msra.mxu0 0
        %2640 = vmatprep.subr.bf16.mxu0 0
        %2641 = vmatpush1.bf16.msra.mxu0 0
        %2642 = vmatprep.subr.bf16.mxu0 0
        %2643 = vmatpush1.bf16.msra.mxu0 0
        %2644 = vmatprep.subr.bf16.mxu0 0
        %2645 = vmatpush1.bf16.msra.mxu0 0
        %2646 = vmatprep.subr.bf16.mxu0 0
        %2647 = vmatpush1.bf16.msra.mxu0 0
        %2648 = vmatprep.subr.bf16.mxu0 0
        %2649 = vmatpush1.bf16.msra.mxu0 0
        %2650 = vmatprep.subr.bf16.mxu0 0
        %2651 = vmatpush1.bf16.msra.mxu0 0
        %2652 = vmatprep.subr.bf16.mxu0 0
        %2653 = vmatpush1.bf16.msra.mxu0 0
        %2654 = vmatprep.subr.bf16.mxu0 0
        %2655 = vmatpush1.bf16.msra.mxu0 0
        %2656 = vmatprep.subr.bf16.mxu0 0
        %2657 = vmatpush1.bf16.msra.mxu0 0
        %2658 = vmatprep.subr.bf16.mxu0 0
        %2659 = vmatpush1.bf16.msra.mxu0 0
        %2660 = vmatprep.mubr.bf16.mxu0 0
        %2661 = vmatmul.mubr.bf16.gmra.mrb[0].mxu0 %v2626
        %v2662 = vpop.f32.mrb[0].mxu0
        %v2663 = vadd.f32 0.0, %v2662
        %v2664 = vpop.f32.mrb[0].mxu0
        %v2665 = vpop.f32.mrb[0].mxu0
        %v2666 = vadd.f32 0.0, %v2665
        %v2667 = vpop.f32.mrb[0].mxu0
        %2668 = vdwg.mxu0
        %v2669 = vadd.f32 %v2583, %v2663
        %v2670 = vadd.f32 %v2586, %v2666
        %v2671 = vld [vmem:[%s866] sm:$0x7]
        %v2672 = vld [vmem:[%s866 + $0x8] sm:$0x7]
        %v2673 = vld [vmem:[%s866 + $0x10] sm:$0x7]
        %v2674 = vld [vmem:[%s866 + $0x18] sm:$0x7]
        %v2680 = vunpack.c.l.s4 1983009808
        %v2681 = vunpack.c.0.s8 %v2680
        %v2682 = vlaneseq
        %v2683 = vshrl.u32 %v2682, 7
        %v2684 = vsub.s32 %v2681, %v2683
        %v2685 = vrot.slane %v2671, %v2684
        %v2686 = vcombine.high %v2685, %v2685
        %v2688 = vunpack.c.l.s4 1983009808
        %v2689 = vunpack.c.0.s8 %v2688
        %v2690 = vlaneseq
        %v2691 = vshrl.u32 %v2690, 7
        %v2692 = vsub.s32 %v2689, %v2691
        %v2693 = vrot.slane %v2672, %v2692
        %v2694 = vcombine.high %v2693, %v2693
        %v2696 = vunpack.c.l.s4 1983009808
        %v2697 = vunpack.c.0.s8 %v2696
        %v2698 = vlaneseq
        %v2699 = vshrl.u32 %v2698, 7
        %v2700 = vsub.s32 %v2697, %v2699
        %v2701 = vrot.slane %v2673, %v2700
        %v2702 = vcombine.high %v2701, %v2701
        %v2704 = vunpack.c.l.s4 1983009808
        %v2705 = vunpack.c.0.s8 %v2704
        %v2706 = vlaneseq
        %v2707 = vshrl.u32 %v2706, 7
        %v2708 = vsub.s32 %v2705, %v2707
        %v2709 = vrot.slane %v2674, %v2708
        %v2710 = vcombine.high %v2709, %v2709
        %v2712 = vshrl.u32 %v2685, 16
        %v2714 = vrot.slane %v2712, 6
        %v2715 = vshll.u32 %v2685, 16
        %v2717 = vrot.slane %v2715, 7
        %v2718 = vor.u32 %v2714, %v2717
        %v2719 = vrot.slane %v2718, 2
        %v2721 = vshll.u32 %v2686, 16
        %v2723 = vrot.slane %v2721, 7
        %v2724 = vsel %vm989, %v2719, %v2723
        %v2726 = vshrl.u32 %v2693, 16
        %v2728 = vrot.slane %v2726, 6
        %v2729 = vshll.u32 %v2693, 16
        %v2731 = vrot.slane %v2729, 7
        %v2732 = vor.u32 %v2728, %v2731
        %v2733 = vrot.slane %v2732, 2
        %v2735 = vshll.u32 %v2694, 16
        %v2737 = vrot.slane %v2735, 7
        %v2738 = vsel %vm989, %v2733, %v2737
        %v2740 = vshrl.u32 %v2701, 16
        %v2742 = vrot.slane %v2740, 6
        %v2743 = vshll.u32 %v2701, 16
        %v2745 = vrot.slane %v2743, 7
        %v2746 = vor.u32 %v2742, %v2745
        %v2747 = vrot.slane %v2746, 2
        %v2749 = vshll.u32 %v2702, 16
        %v2751 = vrot.slane %v2749, 7
        %v2752 = vsel %vm989, %v2747, %v2751
        %v2754 = vshrl.u32 %v2709, 16
        %v2756 = vrot.slane %v2754, 6
        %v2757 = vshll.u32 %v2709, 16
        %v2759 = vrot.slane %v2757, 7
        %v2760 = vor.u32 %v2756, %v2759
        %v2761 = vrot.slane %v2760, 2
        %v2763 = vshll.u32 %v2710, 16
        %v2765 = vrot.slane %v2763, 7
        %v2766 = vsel %vm989, %v2761, %v2765
        %s2767 = scalar_lea.vmem %s6, 16
        %v2768 = vld [vmem:[%s2767] sm:$0xf]
        %v2769 = vld [vmem:[%s2767 + $0x4] sm:$0xf]
        %v2770 = vld [vmem:[%s2767 + $0x8] sm:$0xf]
        %v2771 = vld [vmem:[%s2767 + $0xc] sm:$0xf]
        %v2772 = vcombine.low %v2724, %v2738
        %v2773 = vcombine.low %v2752, %v2766
        %v2775 = vunpack.c.l.s4 1983009808
        %v2776 = vunpack.c.0.s8 %v2775
        %v2777 = vlaneseq
        %v2778 = vshrl.u32 %v2777, 7
        %v2779 = vsub.s32 %v2776, %v2778
        %v2780 = vrot.slane %v2772, %v2779
        %v2782 = vunpack.c.l.s4 1983009808
        %v2783 = vunpack.c.0.s8 %v2782
        %v2784 = vlaneseq
        %v2785 = vshrl.u32 %v2784, 7
        %v2786 = vsub.s32 %v2783, %v2785
        %v2787 = vrot.slane %v2773, %v2786
        %v2788 = vcombine.low %v2780, %v2787
        %v2793 = vunpack.c.l.b16 %v2768
        %v2794 = vunpack.c.l.b16 %v2769
        %v2795 = vunpack.c.l.b16 %v2770
        %v2796 = vunpack.c.l.b16 %v2771
        %v2797 = vpack.c.b16 %v2794, %v2793
        %v2798 = vpack.c.b16 %v2796, %v2795
        %v2802 = vsel %vm2470, %v2788, 0
        %2804 = vmatprep.subr.bf16.mxu0 0
        %2805 = vmatpush1.bf16.msra.mxu0 %v2797
        %2806 = vmatprep.subr.bf16.mxu0 0
        %2807 = vmatpush1.bf16.msra.mxu0 %v2798
        %2808 = vmatprep.subr.bf16.mxu0 0
        %2809 = vmatpush1.bf16.msra.mxu0 0
        %2810 = vmatprep.subr.bf16.mxu0 0
        %2811 = vmatpush1.bf16.msra.mxu0 0
        %2812 = vmatprep.subr.bf16.mxu0 0
        %2813 = vmatpush1.bf16.msra.mxu0 0
        %2814 = vmatprep.subr.bf16.mxu0 0
        %2815 = vmatpush1.bf16.msra.mxu0 0
        %2816 = vmatprep.subr.bf16.mxu0 0
        %2817 = vmatpush1.bf16.msra.mxu0 0
        %2818 = vmatprep.subr.bf16.mxu0 0
        %2819 = vmatpush1.bf16.msra.mxu0 0
        %2820 = vmatprep.subr.bf16.mxu0 0
        %2821 = vmatpush1.bf16.msra.mxu0 0
        %2822 = vmatprep.subr.bf16.mxu0 0
        %2823 = vmatpush1.bf16.msra.mxu0 0
        %2824 = vmatprep.subr.bf16.mxu0 0
        %2825 = vmatpush1.bf16.msra.mxu0 0
        %2826 = vmatprep.subr.bf16.mxu0 0
        %2827 = vmatpush1.bf16.msra.mxu0 0
        %2828 = vmatprep.subr.bf16.mxu0 0
        %2829 = vmatpush1.bf16.msra.mxu0 0
        %2830 = vmatprep.subr.bf16.mxu0 0
        %2831 = vmatpush1.bf16.msra.mxu0 0
        %2832 = vmatprep.subr.bf16.mxu0 0
        %2833 = vmatpush1.bf16.msra.mxu0 0
        %2834 = vmatprep.subr.bf16.mxu0 0
        %2835 = vmatpush1.bf16.msra.mxu0 0
        %2836 = vmatprep.mubr.bf16.mxu0 0
        %2837 = vmatmul.mubr.bf16.gmra.mrb[0].mxu0 %v2802
        %v2838 = vpop.f32.mrb[0].mxu0
        %v2839 = vadd.f32 0.0, %v2838
        %v2840 = vpop.f32.mrb[0].mxu0
        %v2841 = vpop.f32.mrb[0].mxu0
        %v2842 = vadd.f32 0.0, %v2841
        %v2843 = vpop.f32.mrb[0].mxu0
        %2844 = vdwg.mxu0
        %v2845 = vadd.f32 %v2669, %v2839
        %v2846 = vadd.f32 %v2670, %v2842
        %s2847 = scalar_lea.vmem [#allocation2], 12
        %v2848 = vld [vmem:[%s2847] sm:$0x3]
        %v2849 = vld [vmem:[%s2847 + $0x8] sm:$0x3]
        %v2850 = vld [vmem:[%s2847 + $0x10] sm:$0x3]
        %v2851 = vld [vmem:[%s2847 + $0x18] sm:$0x3]
        %s2852 = scalar_lea.vmem %s5, 16
        %v2853 = vld [vmem:[%s2852] sm:$0xf]
        %v2854 = vld [vmem:[%s2852 + $0x4] sm:$0xf]
        %v2859 = vcombine.low %v2848, %v2849
        %v2860 = vcombine.low %v2850, %v2851
        %v2862 = vunpack.c.l.s4 1983009808
        %v2863 = vunpack.c.0.s8 %v2862
        %v2864 = vlaneseq
        %v2865 = vshrl.u32 %v2864, 7
        %v2866 = vsub.s32 %v2863, %v2865
        %v2867 = vrot.slane %v2859, %v2866
        %v2869 = vunpack.c.l.s4 1983009808
        %v2870 = vunpack.c.0.s8 %v2869
        %v2871 = vlaneseq
        %v2872 = vshrl.u32 %v2871, 7
        %v2873 = vsub.s32 %v2870, %v2872
        %v2874 = vrot.slane %v2860, %v2873
        %v2875 = vcombine.low %v2867, %v2874
        %2876 = vrot.lane.b32.xlu0 %v2875, 112
        %v2877 = vpop.permute.xlu0 %2876
        %v2880 = vunpack.c.l.b16 %v2853
        %v2881 = vunpack.c.l.b16 %v2854
        %v2882 = vpack.c.b16 %v2881, %v2880
        %v2885 = vsel %vm2544, %v2877, 0
        %2887 = vmatprep.subr.bf16.mxu0 0
        %2888 = vmatpush1.bf16.msra.mxu0 %v2882
        %2889 = vmatprep.subr.bf16.mxu0 0
        %2890 = vmatpush1.bf16.msra.mxu0 0
        %2891 = vmatprep.subr.bf16.mxu0 0
        %2892 = vmatpush1.bf16.msra.mxu0 0
        %2893 = vmatprep.subr.bf16.mxu0 0
        %2894 = vmatpush1.bf16.msra.mxu0 0
        %2895 = vmatprep.subr.bf16.mxu0 0
        %2896 = vmatpush1.bf16.msra.mxu0 0
        %2897 = vmatprep.subr.bf16.mxu0 0
        %2898 = vmatpush1.bf16.msra.mxu0 0
        %2899 = vmatprep.subr.bf16.mxu0 0
        %2900 = vmatpush1.bf16.msra.mxu0 0
        %2901 = vmatprep.subr.bf16.mxu0 0
        %2902 = vmatpush1.bf16.msra.mxu0 0
        %2903 = vmatprep.subr.bf16.mxu0 0
        %2904 = vmatpush1.bf16.msra.mxu0 0
        %2905 = vmatprep.subr.bf16.mxu0 0
        %2906 = vmatpush1.bf16.msra.mxu0 0
        %2907 = vmatprep.subr.bf16.mxu0 0
        %2908 = vmatpush1.bf16.msra.mxu0 0
        %2909 = vmatprep.subr.bf16.mxu0 0
        %2910 = vmatpush1.bf16.msra.mxu0 0
        %2911 = vmatprep.subr.bf16.mxu0 0
        %2912 = vmatpush1.bf16.msra.mxu0 0
        %2913 = vmatprep.subr.bf16.mxu0 0
        %2914 = vmatpush1.bf16.msra.mxu0 0
        %2915 = vmatprep.subr.bf16.mxu0 0
        %2916 = vmatpush1.bf16.msra.mxu0 0
        %2917 = vmatprep.subr.bf16.mxu0 0
        %2918 = vmatpush1.bf16.msra.mxu0 0
        %2919 = vmatprep.mubr.bf16.mxu0 0
        %2920 = vmatmul.mubr.bf16.gmra.mrb[0].mxu0 %v2885
        %v2921 = vpop.f32.mrb[0].mxu0
        %v2922 = vadd.f32 0.0, %v2921
        %v2923 = vpop.f32.mrb[0].mxu0
        %v2924 = vpop.f32.mrb[0].mxu0
        %v2925 = vadd.f32 0.0, %v2924
        %v2926 = vpop.f32.mrb[0].mxu0
        %2927 = vdwg.mxu0
        %v2928 = vadd.f32 %v2845, %v2922
        %v2929 = vadd.f32 %v2846, %v2925
        %v2930 = vld [vmem:[%s2847] sm:$0x7]
        %v2931 = vld [vmem:[%s2847 + $0x8] sm:$0x7]
        %v2932 = vld [vmem:[%s2847 + $0x10] sm:$0x7]
        %v2933 = vld [vmem:[%s2847 + $0x18] sm:$0x7]
        %v2939 = vunpack.c.l.s4 1983009808
        %v2940 = vunpack.c.0.s8 %v2939
        %v2941 = vlaneseq
        %v2942 = vshrl.u32 %v2941, 7
        %v2943 = vsub.s32 %v2940, %v2942
        %v2944 = vrot.slane %v2930, %v2943
        %v2945 = vcombine.high %v2944, %v2944
        %v2947 = vunpack.c.l.s4 1983009808
        %v2948 = vunpack.c.0.s8 %v2947
        %v2949 = vlaneseq
        %v2950 = vshrl.u32 %v2949, 7
        %v2951 = vsub.s32 %v2948, %v2950
        %v2952 = vrot.slane %v2931, %v2951
        %v2953 = vcombine.high %v2952, %v2952
        %v2955 = vunpack.c.l.s4 1983009808
        %v2956 = vunpack.c.0.s8 %v2955
        %v2957 = vlaneseq
        %v2958 = vshrl.u32 %v2957, 7
        %v2959 = vsub.s32 %v2956, %v2958
        %v2960 = vrot.slane %v2932, %v2959
        %v2961 = vcombine.high %v2960, %v2960
        %v2963 = vunpack.c.l.s4 1983009808
        %v2964 = vunpack.c.0.s8 %v2963
        %v2965 = vlaneseq
        %v2966 = vshrl.u32 %v2965, 7
        %v2967 = vsub.s32 %v2964, %v2966
        %v2968 = vrot.slane %v2933, %v2967
        %v2969 = vcombine.high %v2968, %v2968
        %v2971 = vshrl.u32 %v2944, 16
        %v2973 = vrot.slane %v2971, 6
        %v2974 = vshll.u32 %v2944, 16
        %v2976 = vrot.slane %v2974, 7
        %v2977 = vor.u32 %v2973, %v2976
        %v2978 = vrot.slane %v2977, 2
        %v2980 = vshll.u32 %v2945, 16
        %v2982 = vrot.slane %v2980, 7
        %v2983 = vsel %vm989, %v2978, %v2982
        %v2985 = vshrl.u32 %v2952, 16
        %v2987 = vrot.slane %v2985, 6
        %v2988 = vshll.u32 %v2952, 16
        %v2990 = vrot.slane %v2988, 7
        %v2991 = vor.u32 %v2987, %v2990
        %v2992 = vrot.slane %v2991, 2
        %v2994 = vshll.u32 %v2953, 16
        %v2996 = vrot.slane %v2994, 7
        %v2997 = vsel %vm989, %v2992, %v2996
        %v2999 = vshrl.u32 %v2960, 16
        %v3001 = vrot.slane %v2999, 6
        %v3002 = vshll.u32 %v2960, 16
        %v3004 = vrot.slane %v3002, 7
        %v3005 = vor.u32 %v3001, %v3004
        %v3006 = vrot.slane %v3005, 2
        %v3008 = vshll.u32 %v2961, 16
        %v3010 = vrot.slane %v3008, 7
        %v3011 = vsel %vm989, %v3006, %v3010
        %v3013 = vshrl.u32 %v2968, 16
        %v3015 = vrot.slane %v3013, 6
        %v3016 = vshll.u32 %v2968, 16
        %v3018 = vrot.slane %v3016, 7
        %v3019 = vor.u32 %v3015, %v3018
        %v3020 = vrot.slane %v3019, 2
        %v3022 = vshll.u32 %v2969, 16
        %v3024 = vrot.slane %v3022, 7
        %v3025 = vsel %vm989, %v3020, %v3024
        %s3026 = scalar_lea.vmem %s6, 32
        %v3027 = vld [vmem:[%s3026] sm:$0xf]
        %v3028 = vld [vmem:[%s3026 + $0x4] sm:$0xf]
        %v3029 = vld [vmem:[%s3026 + $0x8] sm:$0xf]
        %v3030 = vld [vmem:[%s3026 + $0xc] sm:$0xf]
        %v3031 = vcombine.low %v2983, %v2997
        %v3032 = vcombine.low %v3011, %v3025
        %v3034 = vunpack.c.l.s4 1983009808
        %v3035 = vunpack.c.0.s8 %v3034
        %v3036 = vlaneseq
        %v3037 = vshrl.u32 %v3036, 7
        %v3038 = vsub.s32 %v3035, %v3037
        %v3039 = vrot.slane %v3031, %v3038
        %v3041 = vunpack.c.l.s4 1983009808
        %v3042 = vunpack.c.0.s8 %v3041
        %v3043 = vlaneseq
        %v3044 = vshrl.u32 %v3043, 7
        %v3045 = vsub.s32 %v3042, %v3044
        %v3046 = vrot.slane %v3032, %v3045
        %v3047 = vcombine.low %v3039, %v3046
        %v3052 = vunpack.c.l.b16 %v3027
        %v3053 = vunpack.c.l.b16 %v3028
        %v3054 = vunpack.c.l.b16 %v3029
        %v3055 = vunpack.c.l.b16 %v3030
        %v3056 = vpack.c.b16 %v3053, %v3052
        %v3057 = vpack.c.b16 %v3055, %v3054
        %v3061 = vsel %vm2470, %v3047, 0
        %3063 = vmatprep.subr.bf16.mxu0 0
        %3064 = vmatpush1.bf16.msra.mxu0 %v3056
        %3065 = vmatprep.subr.bf16.mxu0 0
        %3066 = vmatpush1.bf16.msra.mxu0 %v3057
        %3067 = vmatprep.subr.bf16.mxu0 0
        %3068 = vmatpush1.bf16.msra.mxu0 0
        %3069 = vmatprep.subr.bf16.mxu0 0
        %3070 = vmatpush1.bf16.msra.mxu0 0
        %3071 = vmatprep.subr.bf16.mxu0 0
        %3072 = vmatpush1.bf16.msra.mxu0 0
        %3073 = vmatprep.subr.bf16.mxu0 0
        %3074 = vmatpush1.bf16.msra.mxu0 0
        %3075 = vmatprep.subr.bf16.mxu0 0
        %3076 = vmatpush1.bf16.msra.mxu0 0
        %3077 = vmatprep.subr.bf16.mxu0 0
        %3078 = vmatpush1.bf16.msra.mxu0 0
        %3079 = vmatprep.subr.bf16.mxu0 0
        %3080 = vmatpush1.bf16.msra.mxu0 0
        %3081 = vmatprep.subr.bf16.mxu0 0
        %3082 = vmatpush1.bf16.msra.mxu0 0
        %3083 = vmatprep.subr.bf16.mxu0 0
        %3084 = vmatpush1.bf16.msra.mxu0 0
        %3085 = vmatprep.subr.bf16.mxu0 0
        %3086 = vmatpush1.bf16.msra.mxu0 0
        %3087 = vmatprep.subr.bf16.mxu0 0
        %3088 = vmatpush1.bf16.msra.mxu0 0
        %3089 = vmatprep.subr.bf16.mxu0 0
        %3090 = vmatpush1.bf16.msra.mxu0 0
        %3091 = vmatprep.subr.bf16.mxu0 0
        %3092 = vmatpush1.bf16.msra.mxu0 0
        %3093 = vmatprep.subr.bf16.mxu0 0
        %3094 = vmatpush1.bf16.msra.mxu0 0
        %3095 = vmatprep.mubr.bf16.mxu0 0
        %3096 = vmatmul.mubr.bf16.gmra.mrb[0].mxu0 %v3061
        %v3097 = vpop.f32.mrb[0].mxu0
        %v3098 = vadd.f32 0.0, %v3097
        %v3099 = vpop.f32.mrb[0].mxu0
        %v3100 = vpop.f32.mrb[0].mxu0
        %v3101 = vadd.f32 0.0, %v3100
        %v3102 = vpop.f32.mrb[0].mxu0
        %3103 = vdwg.mxu0
        %v3104 = vadd.f32 %v2928, %v3098
        %v3105 = vadd.f32 %v2929, %v3101
        %v3106 = vld [vmem:[%s7] sm:$0x1]
        %v3108 = vlaneseq
        %v3109 = vshrl.u32 %v3108, 7
        %v3110 = vsub.s32 0, %v3109
        %v3111 = vrot.slane %v3106, %v3110
        %v3113 = vadd.f32 %v3104, %v3111
        %v3114 = vadd.f32 %v3105, %v3111
        %v3115 = vmax.f32 %v3113, 0.0
        %v3116 = vmax.f32 %v3114, 0.0
        %3117 = vst.msk [vmem:[%s298] sm:$0xff] %vm2470, %v3115
        %3118 = vst.msk [vmem:[%s298 + $0x8] sm:$0xff] %vm2470, %v3116
        %s3119 = sand.u32 %s203, 1
        %s3120 = scalar_lea.sflag [#allocation4], %s3119
        %s3121 = sand.u32 %s203, 1
        %s3122 = smul.addr %s3121, 16
        %s3123 = scalar_lea.vmem [#allocation3], %s3122
        // Predicated region
        $region53: #{tpu_custom_call.1} parent=51 // pred_check
          %p3124 = pneg %p213
        $region54: #{tpu_custom_call.1} parent=51 // pred_check_branch
          %3126 = sbr.rel (%p3124) target = $region56
        $region55: #{tpu_custom_call.1} parent=51 // pred_region
          %s3128 = ssub.s32 256, 256
          %3129 = vsyncadd %s3120, %s3128
          %s3130 = smul.addr %s22, 2
          %s3131 = smul.addr %s3130, 128
          %s3132 = scalar_lea.hbm %s8, %s3131
          %s3133 = sshll.u32 %s3123, 4
          %s3134 = int_to_ptr.vmem [resolvable:$true] %s3133
          %3139 = dma.vmem_to_hbm [thread:$0]  %s3134, 256, %s3132, %s3120, 128, 128, 8
        $region56: #{tpu_custom_call.1} parent=51 // pred_fallthru
          _
      $region52: #{tpu_custom_call.1} parent=5 // pred_fallthru
        _
      %p3140 = scmp.le.s32.totalorder 2, %s17
      // Predicated region
      $region57: #{tpu_custom_call.1} parent=5 // pred_check
        %p3141 = pneg %p3140
      $region58: #{tpu_custom_call.1} parent=5 // pred_check_branch
        %3143 = sbr.rel (%p3141) target = $region60
      $region59: #{tpu_custom_call.1} parent=5 // pred_region
        %s3144 = ssub.s32 %s17, 2
        // Predicated region
        $region61: #{tpu_custom_call.1} parent=59 // pred_check
          %p3145 = pneg %p219
        $region62: #{tpu_custom_call.1} parent=59 // pred_check_branch
          %3147 = sbr.rel (%p3145) target = $region64
        $region63: #{tpu_custom_call.1} parent=59 // pred_region
          %s3148 = sand.u32 %s204, 1
          %s3149 = scalar_lea.sflag [#allocation4], %s3148
          %s3150 = sand.u32 %s204, 1
          %s3151 = smul.addr %s3150, 16
          %s3152 = scalar_lea.vmem [#allocation3], %s3151
          %3153 = dma.done %s3149, 256
        $region64: #{tpu_custom_call.1} parent=59 // pred_fallthru
          _
      $region60: #{tpu_custom_call.1} parent=5 // pred_fallthru
        _
    $region6: #{tpu_custom_call.1} parent=1 // loop_footer
      %s21 = sadd.s32 1, %s17
    $region7: #{tpu_custom_call.1} parent=1 // loop_footer_branch
      %16 = sbr.rel target = $region3
    $region8: #{tpu_custom_call.1} parent=1 // loop_exit
      _
    %3154 = vsyncpa [#allocation4], 1
    %s3155 = scalar_lea.sflag [#allocation4], 1
    %3156 = vsyncpa %s3155, 1

</llo_original>
